<compile_context>
chip_gen: v7x
topology: tpu7x:2x2x1
jax: 0.10.0
libtpu: 0.0.40
codegen_flags: <defaults>
</compile_context>

<pallas_src>
import jax
import jax.numpy as jnp
from jax.experimental import pallas as pl
from jax.experimental.pallas import tpu as pltpu


# ---------------------------------------------------------------------------
# Fused kernel: maxpool(2,2) -> conv3x3+ReLU -> conv3x3+ReLU  (one batch image
# per grid step, everything VMEM-resident)
# ---------------------------------------------------------------------------
def _unet_down_kernel(x_ref, w1_ref, b1_ref, w2_ref, b2_ref, o_ref,
                      pad1_ref, col1_ref, pad2_ref, col2_ref):
    H, W, Cin = x_ref.shape            # batch dim squeezed by BlockSpec
    Hp, Wp = H // 2, W // 2
    Cmid = w1_ref.shape[-1]

    # ---- MaxPool2d(2,2), fused (input tile already in VMEM) ----------------
    x00 = x_ref[pl.ds(0, Hp, stride=2), pl.ds(0, Wp, stride=2), :]
    x01 = x_ref[pl.ds(0, Hp, stride=2), pl.ds(1, Wp, stride=2), :]
    x10 = x_ref[pl.ds(1, Hp, stride=2), pl.ds(0, Wp, stride=2), :]
    x11 = x_ref[pl.ds(1, Hp, stride=2), pl.ds(1, Wp, stride=2), :]
    pooled = jnp.maximum(jnp.maximum(x00, x01), jnp.maximum(x10, x11))  # (Hp,Wp,Cin)

    # ---- zero halo in VMEM scratch (replaces wrapper-side jnp.pad) ---------
    # Full zero-fill every step (cheap, VMEM-only) so it stays correct when the
    # batch axis is sharded across cores.
    pad1_ref[...] = jnp.zeros_like(pad1_ref)
    pad1_ref[1:Hp + 1, 1:Wp + 1, :] = pooled

    def conv3x3_relu(pad_ref, col_ref, w_ref, b_ref, cin):
        # im2col into a bf16 VMEM scratch: 9 shifted taps -> one matmul with
        # K = 9*cin (raises MXU utilization ~9x vs 9 tiny-K dots).
        t = 0
        for dy in range(3):
            for dx in range(3):
                tap = pad_ref[dy:dy + Hp, dx:dx + Wp, :].reshape(Hp * Wp, cin)
                col_ref[:, t * cin:(t + 1) * cin] = tap.astype(col_ref.dtype)
                t += 1
        # bf16 operands, f32 accumulate on the MXU; f32 bias + ReLU epilogue.
        acc = jnp.dot(col_ref[...], w_ref[...],
                      preferred_element_type=jnp.float32)        # (Hp*Wp, Cout)
        return jnp.maximum(acc + b_ref[...], 0.0)

    # conv1 + ReLU
    y1 = conv3x3_relu(pad1_ref, col1_ref, w1_ref, b1_ref, Cin)   # (Hp*Wp, Cmid) f32

    # conv2 + ReLU (conv1 output never leaves VMEM)
    pad2_ref[...] = jnp.zeros_like(pad2_ref)
    pad2_ref[1:Hp + 1, 1:Wp + 1, :] = y1.reshape(Hp, Wp, Cmid)
    y2 = conv3x3_relu(pad2_ref, col2_ref, w2_ref, b2_ref, Cmid)  # (Hp*Wp, Cout) f32

    o_ref[...] = y2.astype(o_ref.dtype)


# ---------------------------------------------------------------------------
# Wrapper: NCHW in/out (PyTorch convention), NHWC inside.
# ---------------------------------------------------------------------------
@jax.jit
def unet_down_forward(x_nchw, params):
    N, Cin, H, W = x_nchw.shape
    Hp, Wp = H // 2, W // 2
    Cmid = params["w1"].shape[-1]
    Cout = params["w2"].shape[-1]

    # NCHW -> NHWC once for the whole fused chain.  (In a full UNet these
    # boundary transposes would be hoisted to the model input/output.)
    x = jnp.transpose(x_nchw, (0, 2, 3, 1)).astype(jnp.float32)

    # Weights reshaped to (9*Cin, Cout) matching the im2col tap order
    # (dy-major, dx, then ci); cast to bf16 for the MXU (f32 accumulate).
    w1 = params["w1"].reshape(9 * Cin, Cmid).astype(jnp.bfloat16)
    w2 = params["w2"].reshape(9 * Cmid, Cout).astype(jnp.bfloat16)
    b1 = params["b1"].astype(jnp.float32)            # (1, Cmid)
    b2 = params["b2"].astype(jnp.float32)            # (1, Cout)

    out = pl.pallas_call(
        _unet_down_kernel,
        grid=(N,),
        in_specs=[
            # one batch image per grid step (batch dim squeezed)
            pl.BlockSpec((None, H, W, Cin), lambda b: (b, 0, 0, 0)),
            # weights / biases: constant index_map -> fetched once, VMEM-resident
            pl.BlockSpec((9 * Cin, Cmid), lambda b: (0, 0)),
            pl.BlockSpec((1, Cmid), lambda b: (0, 0)),
            pl.BlockSpec((9 * Cmid, Cout), lambda b: (0, 0)),
            pl.BlockSpec((1, Cout), lambda b: (0, 0)),
        ],
        out_specs=pl.BlockSpec((None, Hp * Wp, Cout), lambda b: (b, 0, 0)),
        out_shape=jax.ShapeDtypeStruct((N, Hp * Wp, Cout), jnp.float32),
        scratch_shapes=[
            pltpu.VMEM((Hp + 2, Wp + 2, Cin), jnp.float32),    # padded pooled input
            pltpu.VMEM((Hp * Wp, 9 * Cin), jnp.bfloat16),      # im2col for conv1
            pltpu.VMEM((Hp + 2, Wp + 2, Cmid), jnp.float32),   # padded conv1 output
            pltpu.VMEM((Hp * Wp, 9 * Cmid), jnp.bfloat16),     # im2col for conv2
        ],
        compiler_params=pltpu.CompilerParams(
            dimension_semantics=("parallel",),   # shard batch over v7x's 2 TCs
        ),
    )(x, w1, b1, w2, b2)

    out = out.reshape(N, Hp, Wp, Cout)           # free reshape in HBM
    return jnp.transpose(out, (0, 3, 1, 2))      # NHWC -> NCHW


def init_params(key, in_size, out_size):
    k1, k2, k3, k4 = jax.random.split(key, 4)
    s1 = 1.0 / jnp.sqrt(3.0 * 3.0 * in_size)
    s2 = 1.0 / jnp.sqrt(3.0 * 3.0 * out_size)
    return {
        "w1": jax.random.normal(k1, (3, 3, in_size, out_size), jnp.float32) * s1,
        "b1": jax.random.normal(k2, (1, out_size), jnp.float32) * s1,
        "w2": jax.random.normal(k3, (3, 3, out_size, out_size), jnp.float32) * s2,
        "b2": jax.random.normal(k4, (1, out_size), jnp.float32) * s2,
    }


# Pure-JAX reference (NCHW, PyTorch semantics) for a sanity check.
def _reference(x_nchw, params):
    p = jax.lax.reduce_window(
        x_nchw, -jnp.inf, jax.lax.max, (1, 1, 2, 2), (1, 1, 2, 2), "VALID"
    )

    def conv(x, w_hwio, b):
        y = jax.lax.conv_general_dilated(
            x, w_hwio, (1, 1), ((1, 1), (1, 1)),
            dimension_numbers=("NCHW", "HWIO", "NCHW"),
            precision=jax.lax.Precision.HIGHEST,
        )
        return jnp.maximum(y + b.reshape(1, -1, 1, 1), 0.0)

    y = conv(p, params["w1"], params["b1"])
    y = conv(y, params["w2"], params["b2"])
    return y


if __name__ == "__main__":
    key = jax.random.PRNGKey(0)
    kx, kp = jax.random.split(key)

    in_size, out_size = 4, 8
    x = jax.random.normal(kx, (2, in_size, 16, 16), jnp.float32)  # NCHW
    params = init_params(kp, in_size, out_size)

    out = jax.block_until_ready(unet_down_forward(x, params))
    assert out.shape == (2, out_size, 8, 8), out.shape

    ref = _reference(x, params)
    # bf16 MXU operands with f32 accumulation -> slightly looser tolerance than
    # a pure-f32 pipeline.
    max_err = float(jnp.max(jnp.abs(out - ref)))
    assert jnp.allclose(out, ref, atol=2e-2, rtol=2e-2), max_err

    print("KERNEL_OK")
</pallas_src>

<mosaic_0001>
module attributes {stable_mosaic.version = 11 : i64} {
  func.func @_unet_down_kernel(%arg0: i32, %arg1: memref<1x16x16x4xf32, #tpu.memory_space<vmem>>, %arg2: memref<36x8xbf16, #tpu.memory_space<vmem>>, %arg3: memref<1x8xf32, #tpu.memory_space<vmem>>, %arg4: memref<72x8xbf16, #tpu.memory_space<vmem>>, %arg5: memref<1x8xf32, #tpu.memory_space<vmem>>, %arg6: memref<1x64x8xf32, #tpu.memory_space<vmem>>, %arg7: memref<10x10x4xf32, #tpu.memory_space<vmem>>, %arg8: memref<64x36xbf16, #tpu.memory_space<vmem>>, %arg9: memref<10x10x8xf32, #tpu.memory_space<vmem>>, %arg10: memref<64x72xbf16, #tpu.memory_space<vmem>>) attributes {dimension_semantics = [#tpu.dimension_semantics<parallel>], iteration_bounds = array<i64: 2>, scalar_prefetch = 0 : i64, scratch_operands = 4 : i64, tpu.core_type = #tpu.core_type<tc>, window_params = [{transform_indices = @transform_0, window_bounds = array<i64: 1, 16, 16, 4>}, {pipeline_mode = #tpu.pipeline_mode<synchronous>, transform_indices = @transform_1, window_bounds = array<i64: 36, 8>}, {pipeline_mode = #tpu.pipeline_mode<synchronous>, transform_indices = @transform_2, window_bounds = array<i64: 1, 8>}, {pipeline_mode = #tpu.pipeline_mode<synchronous>, transform_indices = @transform_3, window_bounds = array<i64: 72, 8>}, {pipeline_mode = #tpu.pipeline_mode<synchronous>, transform_indices = @transform_4, window_bounds = array<i64: 1, 8>}, {transform_indices = @transform_5, window_bounds = array<i64: 1, 64, 8>}]} {
    %c0 = arith.constant 0 : index
    %c0_0 = arith.constant 0 : index
    %c0_1 = arith.constant 0 : index
    %c0_2 = arith.constant 0 : index
    %0 = tpu.strided_load %arg1[%c0, %c0_0, %c0_1, %c0_2] {strides = array<i32: 1, 2, 2, 1>} : memref<1x16x16x4xf32, #tpu.memory_space<vmem>>, vector<1x8x8x4xf32>
    %1 = vector.shape_cast %0 : vector<1x8x8x4xf32> to vector<8x8x4xf32>
    %c0_3 = arith.constant 0 : index
    %c0_4 = arith.constant 0 : index
    %c1 = arith.constant 1 : index
    %c0_5 = arith.constant 0 : index
    %2 = tpu.strided_load %arg1[%c0_3, %c0_4, %c1, %c0_5] {strides = array<i32: 1, 2, 2, 1>} : memref<1x16x16x4xf32, #tpu.memory_space<vmem>>, vector<1x8x8x4xf32>
    %3 = vector.shape_cast %2 : vector<1x8x8x4xf32> to vector<8x8x4xf32>
    %c0_6 = arith.constant 0 : index
    %c1_7 = arith.constant 1 : index
    %c0_8 = arith.constant 0 : index
    %c0_9 = arith.constant 0 : index
    %4 = tpu.strided_load %arg1[%c0_6, %c1_7, %c0_8, %c0_9] {strides = array<i32: 1, 2, 2, 1>} : memref<1x16x16x4xf32, #tpu.memory_space<vmem>>, vector<1x8x8x4xf32>
    %5 = vector.shape_cast %4 : vector<1x8x8x4xf32> to vector<8x8x4xf32>
    %c0_10 = arith.constant 0 : index
    %c1_11 = arith.constant 1 : index
    %c1_12 = arith.constant 1 : index
    %c0_13 = arith.constant 0 : index
    %6 = tpu.strided_load %arg1[%c0_10, %c1_11, %c1_12, %c0_13] {strides = array<i32: 1, 2, 2, 1>} : memref<1x16x16x4xf32, #tpu.memory_space<vmem>>, vector<1x8x8x4xf32>
    %7 = vector.shape_cast %6 : vector<1x8x8x4xf32> to vector<8x8x4xf32>
    %8 = arith.maximumf %1, %3 : vector<8x8x4xf32>
    %9 = arith.maximumf %5, %7 : vector<8x8x4xf32>
    %10 = arith.maximumf %8, %9 : vector<8x8x4xf32>
    %cst = arith.constant 0.000000e+00 : f32
    %11 = vector.broadcast %cst : f32 to vector<10x10x4xf32>
    %c0_14 = arith.constant 0 : index
    %c0_15 = arith.constant 0 : index
    %c0_16 = arith.constant 0 : index
    %12 = vector.load %arg7[%c0_14, %c0_15, %c0_16] : memref<10x10x4xf32, #tpu.memory_space<vmem>>, vector<10x10x4xf32>
    tpu.vector_store %arg7[%c0_14, %c0_15, %c0_16], %11 {strides = array<i32>} : memref<10x10x4xf32, #tpu.memory_space<vmem>>, vector<10x10x4xf32>,
    %c1_17 = arith.constant 1 : index
    %c1_18 = arith.constant 1 : index
    %c0_19 = arith.constant 0 : index
    %13 = vector.load %arg7[%c1_17, %c1_18, %c0_19] : memref<10x10x4xf32, #tpu.memory_space<vmem>>, vector<8x8x4xf32>
    tpu.vector_store %arg7[%c1_17, %c1_18, %c0_19], %10 {strides = array<i32>} : memref<10x10x4xf32, #tpu.memory_space<vmem>>, vector<8x8x4xf32>,
    %c0_20 = arith.constant 0 : index
    %c0_21 = arith.constant 0 : index
    %c0_22 = arith.constant 0 : index
    %14 = vector.load %arg7[%c0_20, %c0_21, %c0_22] : memref<10x10x4xf32, #tpu.memory_space<vmem>>, vector<8x8x4xf32>
    %15 = vector.shape_cast %14 : vector<8x8x4xf32> to vector<64x4xf32>
    %16 = arith.truncf %15 : vector<64x4xf32> to vector<64x4xbf16>
    %c0_23 = arith.constant 0 : index
    %c0_24 = arith.constant 0 : index
    %17 = vector.load %arg8[%c0_23, %c0_24] : memref<64x36xbf16, #tpu.memory_space<vmem>>, vector<64x4xbf16>
    tpu.vector_store %arg8[%c0_23, %c0_24], %16 {strides = array<i32>} : memref<64x36xbf16, #tpu.memory_space<vmem>>, vector<64x4xbf16>,
    %c0_25 = arith.constant 0 : index
    %c1_26 = arith.constant 1 : index
    %c0_27 = arith.constant 0 : index
    %18 = vector.load %arg7[%c0_25, %c1_26, %c0_27] : memref<10x10x4xf32, #tpu.memory_space<vmem>>, vector<8x8x4xf32>
    %19 = vector.shape_cast %18 : vector<8x8x4xf32> to vector<64x4xf32>
    %20 = arith.truncf %19 : vector<64x4xf32> to vector<64x4xbf16>
    %c0_28 = arith.constant 0 : index
    %c4 = arith.constant 4 : index
    %21 = vector.load %arg8[%c0_28, %c4] : memref<64x36xbf16, #tpu.memory_space<vmem>>, vector<64x4xbf16>
    tpu.vector_store %arg8[%c0_28, %c4], %20 {strides = array<i32>} : memref<64x36xbf16, #tpu.memory_space<vmem>>, vector<64x4xbf16>,
    %c0_29 = arith.constant 0 : index
    %c2 = arith.constant 2 : index
    %c0_30 = arith.constant 0 : index
    %22 = vector.load %arg7[%c0_29, %c2, %c0_30] : memref<10x10x4xf32, #tpu.memory_space<vmem>>, vector<8x8x4xf32>
    %23 = vector.shape_cast %22 : vector<8x8x4xf32> to vector<64x4xf32>
    %24 = arith.truncf %23 : vector<64x4xf32> to vector<64x4xbf16>
    %c0_31 = arith.constant 0 : index
    %c8 = arith.constant 8 : index
    %25 = vector.load %arg8[%c0_31, %c8] : memref<64x36xbf16, #tpu.memory_space<vmem>>, vector<64x4xbf16>
    tpu.vector_store %arg8[%c0_31, %c8], %24 {strides = array<i32>} : memref<64x36xbf16, #tpu.memory_space<vmem>>, vector<64x4xbf16>,
    %c1_32 = arith.constant 1 : index
    %c0_33 = arith.constant 0 : index
    %c0_34 = arith.constant 0 : index
    %26 = vector.load %arg7[%c1_32, %c0_33, %c0_34] : memref<10x10x4xf32, #tpu.memory_space<vmem>>, vector<8x8x4xf32>
    %27 = vector.shape_cast %26 : vector<8x8x4xf32> to vector<64x4xf32>
    %28 = arith.truncf %27 : vector<64x4xf32> to vector<64x4xbf16>
    %c0_35 = arith.constant 0 : index
    %c12 = arith.constant 12 : index
    %29 = vector.load %arg8[%c0_35, %c12] : memref<64x36xbf16, #tpu.memory_space<vmem>>, vector<64x4xbf16>
    tpu.vector_store %arg8[%c0_35, %c12], %28 {strides = array<i32>} : memref<64x36xbf16, #tpu.memory_space<vmem>>, vector<64x4xbf16>,
    %c1_36 = arith.constant 1 : index
    %c1_37 = arith.constant 1 : index
    %c0_38 = arith.constant 0 : index
    %30 = vector.load %arg7[%c1_36, %c1_37, %c0_38] : memref<10x10x4xf32, #tpu.memory_space<vmem>>, vector<8x8x4xf32>
    %31 = vector.shape_cast %30 : vector<8x8x4xf32> to vector<64x4xf32>
    %32 = arith.truncf %31 : vector<64x4xf32> to vector<64x4xbf16>
    %c0_39 = arith.constant 0 : index
    %c16 = arith.constant 16 : index
    %33 = vector.load %arg8[%c0_39, %c16] : memref<64x36xbf16, #tpu.memory_space<vmem>>, vector<64x4xbf16>
    tpu.vector_store %arg8[%c0_39, %c16], %32 {strides = array<i32>} : memref<64x36xbf16, #tpu.memory_space<vmem>>, vector<64x4xbf16>,
    %c1_40 = arith.constant 1 : index
    %c2_41 = arith.constant 2 : index
    %c0_42 = arith.constant 0 : index
    %34 = vector.load %arg7[%c1_40, %c2_41, %c0_42] : memref<10x10x4xf32, #tpu.memory_space<vmem>>, vector<8x8x4xf32>
    %35 = vector.shape_cast %34 : vector<8x8x4xf32> to vector<64x4xf32>
    %36 = arith.truncf %35 : vector<64x4xf32> to vector<64x4xbf16>
    %c0_43 = arith.constant 0 : index
    %c20 = arith.constant 20 : index
    %37 = vector.load %arg8[%c0_43, %c20] : memref<64x36xbf16, #tpu.memory_space<vmem>>, vector<64x4xbf16>
    tpu.vector_store %arg8[%c0_43, %c20], %36 {strides = array<i32>} : memref<64x36xbf16, #tpu.memory_space<vmem>>, vector<64x4xbf16>,
    %c2_44 = arith.constant 2 : index
    %c0_45 = arith.constant 0 : index
    %c0_46 = arith.constant 0 : index
    %38 = vector.load %arg7[%c2_44, %c0_45, %c0_46] : memref<10x10x4xf32, #tpu.memory_space<vmem>>, vector<8x8x4xf32>
    %39 = vector.shape_cast %38 : vector<8x8x4xf32> to vector<64x4xf32>
    %40 = arith.truncf %39 : vector<64x4xf32> to vector<64x4xbf16>
    %c0_47 = arith.constant 0 : index
    %c24 = arith.constant 24 : index
    %41 = vector.load %arg8[%c0_47, %c24] : memref<64x36xbf16, #tpu.memory_space<vmem>>, vector<64x4xbf16>
    tpu.vector_store %arg8[%c0_47, %c24], %40 {strides = array<i32>} : memref<64x36xbf16, #tpu.memory_space<vmem>>, vector<64x4xbf16>,
    %c2_48 = arith.constant 2 : index
    %c1_49 = arith.constant 1 : index
    %c0_50 = arith.constant 0 : index
    %42 = vector.load %arg7[%c2_48, %c1_49, %c0_50] : memref<10x10x4xf32, #tpu.memory_space<vmem>>, vector<8x8x4xf32>
    %43 = vector.shape_cast %42 : vector<8x8x4xf32> to vector<64x4xf32>
    %44 = arith.truncf %43 : vector<64x4xf32> to vector<64x4xbf16>
    %c0_51 = arith.constant 0 : index
    %c28 = arith.constant 28 : index
    %45 = vector.load %arg8[%c0_51, %c28] : memref<64x36xbf16, #tpu.memory_space<vmem>>, vector<64x4xbf16>
    tpu.vector_store %arg8[%c0_51, %c28], %44 {strides = array<i32>} : memref<64x36xbf16, #tpu.memory_space<vmem>>, vector<64x4xbf16>,
    %c2_52 = arith.constant 2 : index
    %c2_53 = arith.constant 2 : index
    %c0_54 = arith.constant 0 : index
    %46 = vector.load %arg7[%c2_52, %c2_53, %c0_54] : memref<10x10x4xf32, #tpu.memory_space<vmem>>, vector<8x8x4xf32>
    %47 = vector.shape_cast %46 : vector<8x8x4xf32> to vector<64x4xf32>
    %48 = arith.truncf %47 : vector<64x4xf32> to vector<64x4xbf16>
    %c0_55 = arith.constant 0 : index
    %c32 = arith.constant 32 : index
    %49 = vector.load %arg8[%c0_55, %c32] : memref<64x36xbf16, #tpu.memory_space<vmem>>, vector<64x4xbf16>
    tpu.vector_store %arg8[%c0_55, %c32], %48 {strides = array<i32>} : memref<64x36xbf16, #tpu.memory_space<vmem>>, vector<64x4xbf16>,
    %c0_56 = arith.constant 0 : index
    %c0_57 = arith.constant 0 : index
    %50 = vector.load %arg8[%c0_56, %c0_57] : memref<64x36xbf16, #tpu.memory_space<vmem>>, vector<64x36xbf16>
    %c0_58 = arith.constant 0 : index
    %c0_59 = arith.constant 0 : index
    %51 = vector.load %arg2[%c0_58, %c0_59] : memref<36x8xbf16, #tpu.memory_space<vmem>>, vector<36x8xbf16>
    %cst_60 = arith.constant dense<0.000000e+00> : vector<64x8xf32>
    %52 = tpu.matmul %50, %51, %cst_60 {dimension_numbers = #tpu.dot_dimension_numbers<[1], [0], [0], [1], [0, 0, 1, 1], [], []>} : vector<64x36xbf16>, vector<36x8xbf16>, vector<64x8xf32> -> vector<64x8xf32>
    %c0_61 = arith.constant 0 : index
    %c0_62 = arith.constant 0 : index
    %53 = vector.load %arg3[%c0_61, %c0_62] : memref<1x8xf32, #tpu.memory_space<vmem>>, vector<1x8xf32>
    %54 = vector.broadcast %53 : vector<1x8xf32> to vector<64x8xf32>
    %55 = arith.addf %52, %54 : vector<64x8xf32>
    %cst_63 = arith.constant 0.000000e+00 : f32
    %56 = vector.broadcast %cst_63 : f32 to vector<64x8xf32>
    %57 = arith.maximumf %55, %56 : vector<64x8xf32>
    %cst_64 = arith.constant 0.000000e+00 : f32
    %58 = vector.broadcast %cst_64 : f32 to vector<10x10x8xf32>
    %c0_65 = arith.constant 0 : index
    %c0_66 = arith.constant 0 : index
    %c0_67 = arith.constant 0 : index
    %59 = vector.load %arg9[%c0_65, %c0_66, %c0_67] : memref<10x10x8xf32, #tpu.memory_space<vmem>>, vector<10x10x8xf32>
    tpu.vector_store %arg9[%c0_65, %c0_66, %c0_67], %58 {strides = array<i32>} : memref<10x10x8xf32, #tpu.memory_space<vmem>>, vector<10x10x8xf32>,
    %60 = vector.shape_cast %57 : vector<64x8xf32> to vector<8x8x8xf32>
    %c1_68 = arith.constant 1 : index
    %c1_69 = arith.constant 1 : index
    %c0_70 = arith.constant 0 : index
    %61 = vector.load %arg9[%c1_68, %c1_69, %c0_70] : memref<10x10x8xf32, #tpu.memory_space<vmem>>, vector<8x8x8xf32>
    tpu.vector_store %arg9[%c1_68, %c1_69, %c0_70], %60 {strides = array<i32>} : memref<10x10x8xf32, #tpu.memory_space<vmem>>, vector<8x8x8xf32>,
    %c0_71 = arith.constant 0 : index
    %c0_72 = arith.constant 0 : index
    %c0_73 = arith.constant 0 : index
    %62 = vector.load %arg9[%c0_71, %c0_72, %c0_73] : memref<10x10x8xf32, #tpu.memory_space<vmem>>, vector<8x8x8xf32>
    %63 = vector.shape_cast %62 : vector<8x8x8xf32> to vector<64x8xf32>
    %64 = arith.truncf %63 : vector<64x8xf32> to vector<64x8xbf16>
    %c0_74 = arith.constant 0 : index
    %c0_75 = arith.constant 0 : index
    %65 = vector.load %arg10[%c0_74, %c0_75] : memref<64x72xbf16, #tpu.memory_space<vmem>>, vector<64x8xbf16>
    tpu.vector_store %arg10[%c0_74, %c0_75], %64 {strides = array<i32>} : memref<64x72xbf16, #tpu.memory_space<vmem>>, vector<64x8xbf16>,
    %c0_76 = arith.constant 0 : index
    %c1_77 = arith.constant 1 : index
    %c0_78 = arith.constant 0 : index
    %66 = vector.load %arg9[%c0_76, %c1_77, %c0_78] : memref<10x10x8xf32, #tpu.memory_space<vmem>>, vector<8x8x8xf32>
    %67 = vector.shape_cast %66 : vector<8x8x8xf32> to vector<64x8xf32>
    %68 = arith.truncf %67 : vector<64x8xf32> to vector<64x8xbf16>
    %c0_79 = arith.constant 0 : index
    %c8_80 = arith.constant 8 : index
    %69 = vector.load %arg10[%c0_79, %c8_80] : memref<64x72xbf16, #tpu.memory_space<vmem>>, vector<64x8xbf16>
    tpu.vector_store %arg10[%c0_79, %c8_80], %68 {strides = array<i32>} : memref<64x72xbf16, #tpu.memory_space<vmem>>, vector<64x8xbf16>,
    %c0_81 = arith.constant 0 : index
    %c2_82 = arith.constant 2 : index
    %c0_83 = arith.constant 0 : index
    %70 = vector.load %arg9[%c0_81, %c2_82, %c0_83] : memref<10x10x8xf32, #tpu.memory_space<vmem>>, vector<8x8x8xf32>
    %71 = vector.shape_cast %70 : vector<8x8x8xf32> to vector<64x8xf32>
    %72 = arith.truncf %71 : vector<64x8xf32> to vector<64x8xbf16>
    %c0_84 = arith.constant 0 : index
    %c16_85 = arith.constant 16 : index
    %73 = vector.load %arg10[%c0_84, %c16_85] : memref<64x72xbf16, #tpu.memory_space<vmem>>, vector<64x8xbf16>
    tpu.vector_store %arg10[%c0_84, %c16_85], %72 {strides = array<i32>} : memref<64x72xbf16, #tpu.memory_space<vmem>>, vector<64x8xbf16>,
    %c1_86 = arith.constant 1 : index
    %c0_87 = arith.constant 0 : index
    %c0_88 = arith.constant 0 : index
    %74 = vector.load %arg9[%c1_86, %c0_87, %c0_88] : memref<10x10x8xf32, #tpu.memory_space<vmem>>, vector<8x8x8xf32>
    %75 = vector.shape_cast %74 : vector<8x8x8xf32> to vector<64x8xf32>
    %76 = arith.truncf %75 : vector<64x8xf32> to vector<64x8xbf16>
    %c0_89 = arith.constant 0 : index
    %c24_90 = arith.constant 24 : index
    %77 = vector.load %arg10[%c0_89, %c24_90] : memref<64x72xbf16, #tpu.memory_space<vmem>>, vector<64x8xbf16>
    tpu.vector_store %arg10[%c0_89, %c24_90], %76 {strides = array<i32>} : memref<64x72xbf16, #tpu.memory_space<vmem>>, vector<64x8xbf16>,
    %c1_91 = arith.constant 1 : index
    %c1_92 = arith.constant 1 : index
    %c0_93 = arith.constant 0 : index
    %78 = vector.load %arg9[%c1_91, %c1_92, %c0_93] : memref<10x10x8xf32, #tpu.memory_space<vmem>>, vector<8x8x8xf32>
    %79 = vector.shape_cast %78 : vector<8x8x8xf32> to vector<64x8xf32>
    %80 = arith.truncf %79 : vector<64x8xf32> to vector<64x8xbf16>
    %c0_94 = arith.constant 0 : index
    %c32_95 = arith.constant 32 : index
    %81 = vector.load %arg10[%c0_94, %c32_95] : memref<64x72xbf16, #tpu.memory_space<vmem>>, vector<64x8xbf16>
    tpu.vector_store %arg10[%c0_94, %c32_95], %80 {strides = array<i32>} : memref<64x72xbf16, #tpu.memory_space<vmem>>, vector<64x8xbf16>,
    %c1_96 = arith.constant 1 : index
    %c2_97 = arith.constant 2 : index
    %c0_98 = arith.constant 0 : index
    %82 = vector.load %arg9[%c1_96, %c2_97, %c0_98] : memref<10x10x8xf32, #tpu.memory_space<vmem>>, vector<8x8x8xf32>
    %83 = vector.shape_cast %82 : vector<8x8x8xf32> to vector<64x8xf32>
    %84 = arith.truncf %83 : vector<64x8xf32> to vector<64x8xbf16>
    %c0_99 = arith.constant 0 : index
    %c40 = arith.constant 40 : index
    %85 = vector.load %arg10[%c0_99, %c40] : memref<64x72xbf16, #tpu.memory_space<vmem>>, vector<64x8xbf16>
    tpu.vector_store %arg10[%c0_99, %c40], %84 {strides = array<i32>} : memref<64x72xbf16, #tpu.memory_space<vmem>>, vector<64x8xbf16>,
    %c2_100 = arith.constant 2 : index
    %c0_101 = arith.constant 0 : index
    %c0_102 = arith.constant 0 : index
    %86 = vector.load %arg9[%c2_100, %c0_101, %c0_102] : memref<10x10x8xf32, #tpu.memory_space<vmem>>, vector<8x8x8xf32>
    %87 = vector.shape_cast %86 : vector<8x8x8xf32> to vector<64x8xf32>
    %88 = arith.truncf %87 : vector<64x8xf32> to vector<64x8xbf16>
    %c0_103 = arith.constant 0 : index
    %c48 = arith.constant 48 : index
    %89 = vector.load %arg10[%c0_103, %c48] : memref<64x72xbf16, #tpu.memory_space<vmem>>, vector<64x8xbf16>
    tpu.vector_store %arg10[%c0_103, %c48], %88 {strides = array<i32>} : memref<64x72xbf16, #tpu.memory_space<vmem>>, vector<64x8xbf16>,
    %c2_104 = arith.constant 2 : index
    %c1_105 = arith.constant 1 : index
    %c0_106 = arith.constant 0 : index
    %90 = vector.load %arg9[%c2_104, %c1_105, %c0_106] : memref<10x10x8xf32, #tpu.memory_space<vmem>>, vector<8x8x8xf32>
    %91 = vector.shape_cast %90 : vector<8x8x8xf32> to vector<64x8xf32>
    %92 = arith.truncf %91 : vector<64x8xf32> to vector<64x8xbf16>
    %c0_107 = arith.constant 0 : index
    %c56 = arith.constant 56 : index
    %93 = vector.load %arg10[%c0_107, %c56] : memref<64x72xbf16, #tpu.memory_space<vmem>>, vector<64x8xbf16>
    tpu.vector_store %arg10[%c0_107, %c56], %92 {strides = array<i32>} : memref<64x72xbf16, #tpu.memory_space<vmem>>, vector<64x8xbf16>,
    %c2_108 = arith.constant 2 : index
    %c2_109 = arith.constant 2 : index
    %c0_110 = arith.constant 0 : index
    %94 = vector.load %arg9[%c2_108, %c2_109, %c0_110] : memref<10x10x8xf32, #tpu.memory_space<vmem>>, vector<8x8x8xf32>
    %95 = vector.shape_cast %94 : vector<8x8x8xf32> to vector<64x8xf32>
    %96 = arith.truncf %95 : vector<64x8xf32> to vector<64x8xbf16>
    %c0_111 = arith.constant 0 : index
    %c64 = arith.constant 64 : index
    %97 = vector.load %arg10[%c0_111, %c64] : memref<64x72xbf16, #tpu.memory_space<vmem>>, vector<64x8xbf16>
    tpu.vector_store %arg10[%c0_111, %c64], %96 {strides = array<i32>} : memref<64x72xbf16, #tpu.memory_space<vmem>>, vector<64x8xbf16>,
    %c0_112 = arith.constant 0 : index
    %c0_113 = arith.constant 0 : index
    %98 = vector.load %arg10[%c0_112, %c0_113] : memref<64x72xbf16, #tpu.memory_space<vmem>>, vector<64x72xbf16>
    %c0_114 = arith.constant 0 : index
    %c0_115 = arith.constant 0 : index
    %99 = vector.load %arg4[%c0_114, %c0_115] : memref<72x8xbf16, #tpu.memory_space<vmem>>, vector<72x8xbf16>
    %cst_116 = arith.constant dense<0.000000e+00> : vector<64x8xf32>
    %100 = tpu.matmul %98, %99, %cst_116 {dimension_numbers = #tpu.dot_dimension_numbers<[1], [0], [0], [1], [0, 0, 1, 1], [], []>} : vector<64x72xbf16>, vector<72x8xbf16>, vector<64x8xf32> -> vector<64x8xf32>
    %c0_117 = arith.constant 0 : index
    %c0_118 = arith.constant 0 : index
    %101 = vector.load %arg5[%c0_117, %c0_118] : memref<1x8xf32, #tpu.memory_space<vmem>>, vector<1x8xf32>
    %102 = vector.broadcast %101 : vector<1x8xf32> to vector<64x8xf32>
    %103 = arith.addf %100, %102 : vector<64x8xf32>
    %cst_119 = arith.constant 0.000000e+00 : f32
    %104 = vector.broadcast %cst_119 : f32 to vector<64x8xf32>
    %105 = arith.maximumf %103, %104 : vector<64x8xf32>
    %c0_120 = arith.constant 0 : index
    %c0_121 = arith.constant 0 : index
    %c0_122 = arith.constant 0 : index
    %106 = vector.load %arg6[%c0_120, %c0_121, %c0_122] : memref<1x64x8xf32, #tpu.memory_space<vmem>>, vector<1x64x8xf32>
    %107 = vector.shape_cast %106 : vector<1x64x8xf32> to vector<64x8xf32>
    %108 = vector.shape_cast %105 : vector<64x8xf32> to vector<1x64x8xf32>
    tpu.vector_store %arg6[%c0_120, %c0_121, %c0_122], %108 {strides = array<i32>} : memref<1x64x8xf32, #tpu.memory_space<vmem>>, vector<1x64x8xf32>,
    return
  }
  func.func @transform_0(%arg0: i32) -> (i32, i32, i32, i32) {
    %c0_i32 = arith.constant 0 : i32
    %c0_i32_0 = arith.constant 0 : i32
    %c0_i32_1 = arith.constant 0 : i32
    %c0_i32_2 = arith.constant 0 : i32
    return %arg0, %c0_i32, %c0_i32_0, %c0_i32_1 : i32, i32, i32, i32
  }
  func.func @transform_1(%arg0: i32) -> (i32, i32) {
    %c0_i32 = arith.constant 0 : i32
    %c0_i32_0 = arith.constant 0 : i32
    %c0_i32_1 = arith.constant 0 : i32
    return %c0_i32, %c0_i32_0 : i32, i32
  }
  func.func @transform_2(%arg0: i32) -> (i32, i32) {
    %c0_i32 = arith.constant 0 : i32
    %c0_i32_0 = arith.constant 0 : i32
    %c0_i32_1 = arith.constant 0 : i32
    return %c0_i32, %c0_i32_0 : i32, i32
  }
  func.func @transform_3(%arg0: i32) -> (i32, i32) {
    %c0_i32 = arith.constant 0 : i32
    %c0_i32_0 = arith.constant 0 : i32
    %c0_i32_1 = arith.constant 0 : i32
    return %c0_i32, %c0_i32_0 : i32, i32
  }
  func.func @transform_4(%arg0: i32) -> (i32, i32) {
    %c0_i32 = arith.constant 0 : i32
    %c0_i32_0 = arith.constant 0 : i32
    %c0_i32_1 = arith.constant 0 : i32
    return %c0_i32, %c0_i32_0 : i32, i32
  }
  func.func @transform_5(%arg0: i32) -> (i32, i32, i32) {
    %c0_i32 = arith.constant 0 : i32
    %c0_i32_0 = arith.constant 0 : i32
    %c0_i32_1 = arith.constant 0 : i32
    return %arg0, %c0_i32, %c0_i32_0 : i32, i32, i32
  }
}

</mosaic_0001>

<llo_original>
// kernel: unet_down_forward.1
$region0: #{unet_down_forward.1}
  #allocation0 [shape = 'u32[]', space=smem, size = 0x4, offset = 0x4, fixed_abs, tag = 'smem constant byte address 0x4 - core index']
  #allocation1 [shape = 'u32[144,128]{1,0:T(1,128)}', space=vmem, size = 0x12000, scoped, tag = 'internal scratch']
  #allocation2 [shape = 'f32[10,10,4]{2,1,0:T(8,128)}', space=vmem, size = 0x14000, scoped, tag = 'scratch operand']
  #allocation3 [shape = 'bf16[64,36]{1,0:T(16,128)(2,1)}', space=vmem, size = 0x4000, scoped, tag = 'scratch operand']
  #allocation4 [shape = 'f32[10,10,8]{2,1,0:T(8,128)}', space=vmem, size = 0x14000, scoped, tag = 'scratch operand']
  #allocation5 [shape = 'bf16[64,72]{1,0:T(16,128)(2,1)}', space=vmem, size = 0x4000, scoped, tag = 'scratch operand']
  %s0 = inlined_call_operand.vmem [shape: f32[2,16,16,4], index: 0, kind: input, shape index: {}]
  %s1 = inlined_call_operand.vmem [shape: bf16[36,8], index: 1, kind: input, shape index: {}]
  %s2 = inlined_call_operand.vmem [shape: f32[1,8], index: 2, kind: input, shape index: {}]
  %s3 = inlined_call_operand.vmem [shape: bf16[72,8], index: 3, kind: input, shape index: {}]
  %s4 = inlined_call_operand.vmem [shape: f32[1,8], index: 4, kind: input, shape index: {}]
  %s5 = inlined_call_operand.vmem [shape: f32[2,64,8], index: 5, kind: output, shape index: {}]
  %s6 = sld [smem:[#allocation0]]
  $region53: #{unet_down_forward.1} parent=0
    _
  %s8 = ssub.s32 1, %s6
  %s9 = scalar_select 0, %s8, %s6
  loop: start=0, step=1, limit=4
  $region2: #{unet_down_forward.1} parent=0 // loop_pre_header
    _
  $region3: #{unet_down_forward.1} parent=0 // loop_header
    %s11 = sphi 0, %s15
    %p12 = scmp.ge.s32.totalorder %s11, 4
    %s21 = sphi 0, %s23
    %s24 = sphi 0, %s21
    %s25 = sphi 0, %s24
    %s41 = sphi 0, %s25
    %s45 = sphi 0, %s45
    %s47 = sphi 0, %s45
    %s48 = sphi 0, %s47
    %s62 = sphi 0, %s48
    %s66 = sphi 0, %s66
    %s68 = sphi 0, %s66
    %s69 = sphi 0, %s68
    %s83 = sphi 0, %s69
    %s87 = sphi 0, %s87
    %s89 = sphi 0, %s87
    %s90 = sphi 0, %s89
    %s104 = sphi 0, %s90
    %s108 = sphi 0, %s108
    %s110 = sphi 0, %s108
    %s111 = sphi 0, %s110
    %s125 = sphi 0, %s111
    %s131 = sphi 0, %s133
    %s134 = sphi 0, %s131
    %s135 = sphi 0, %s134
    %s151 = sphi 0, %s135
  $region4: #{unet_down_forward.1} parent=0 // loop_header_branch
    %14 = sbr.rel (%p12) target = $region8
  $region5: #{unet_down_forward.1} parent=0 // loop_body
    %s16 = ssub.s32 %s11, 1
    %s17 = ssub.s32 %s11, 2
    %s18 = sadd.s32 %s11, 1
    %s19 = ssub.s32 %s11, %s18
    %p20 = scmp.eq.s32.totalorder %s19, 0
    %s22 = sadd.s32 %s21, 1
    %s23 = scalar_select %p20, %s21, %s22
    %p26 = pneg %p20
    %p27 = scmp.eq.s32.totalorder %s11, 1
    %p28 = por %p26, %p27
    %p29 = scmp.ne.s32.totalorder %s21, %s24
    %p30 = scmp.eq.s32.totalorder %s11, 0
    %p31 = por %p29, %p30
    %p32 = scmp.ne.s32.totalorder %s21, %s24
    %p33 = scmp.eq.s32.totalorder %s16, 1
    %p34 = por %p32, %p33
    %p35 = scmp.ne.s32.totalorder %s24, %s25
    %p36 = scmp.eq.s32.totalorder %s16, 0
    %p37 = por %p35, %p36
    %p38 = scmp.ne.s32.totalorder %s24, %s25
    %p39 = scmp.eq.s32.totalorder %s17, 1
    %p40 = por %p38, %p39
    %p42 = scmp.ne.s32.totalorder %s25, %s41
    %p43 = scmp.eq.s32.totalorder %s17, 0
    %p44 = por %p42, %p43
    %s46 = sadd.s32 %s45, 1
    %p49 = scmp.eq.s32.totalorder %s11, 1
    %p50 = scmp.ne.s32.totalorder %s45, %s47
    %p51 = scmp.eq.s32.totalorder %s11, 0
    %p52 = por %p50, %p51
    %p53 = scmp.ne.s32.totalorder %s45, %s47
    %p54 = scmp.eq.s32.totalorder %s16, 1
    %p55 = por %p53, %p54
    %p56 = scmp.ne.s32.totalorder %s47, %s48
    %p57 = scmp.eq.s32.totalorder %s16, 0
    %p58 = por %p56, %p57
    %p59 = scmp.ne.s32.totalorder %s47, %s48
    %p60 = scmp.eq.s32.totalorder %s17, 1
    %p61 = por %p59, %p60
    %p63 = scmp.ne.s32.totalorder %s48, %s62
    %p64 = scmp.eq.s32.totalorder %s17, 0
    %p65 = por %p63, %p64
    %s67 = sadd.s32 %s66, 1
    %p70 = scmp.eq.s32.totalorder %s11, 1
    %p71 = scmp.ne.s32.totalorder %s66, %s68
    %p72 = scmp.eq.s32.totalorder %s11, 0
    %p73 = por %p71, %p72
    %p74 = scmp.ne.s32.totalorder %s66, %s68
    %p75 = scmp.eq.s32.totalorder %s16, 1
    %p76 = por %p74, %p75
    %p77 = scmp.ne.s32.totalorder %s68, %s69
    %p78 = scmp.eq.s32.totalorder %s16, 0
    %p79 = por %p77, %p78
    %p80 = scmp.ne.s32.totalorder %s68, %s69
    %p81 = scmp.eq.s32.totalorder %s17, 1
    %p82 = por %p80, %p81
    %p84 = scmp.ne.s32.totalorder %s69, %s83
    %p85 = scmp.eq.s32.totalorder %s17, 0
    %p86 = por %p84, %p85
    %s88 = sadd.s32 %s87, 1
    %p91 = scmp.eq.s32.totalorder %s11, 1
    %p92 = scmp.ne.s32.totalorder %s87, %s89
    %p93 = scmp.eq.s32.totalorder %s11, 0
    %p94 = por %p92, %p93
    %p95 = scmp.ne.s32.totalorder %s87, %s89
    %p96 = scmp.eq.s32.totalorder %s16, 1
    %p97 = por %p95, %p96
    %p98 = scmp.ne.s32.totalorder %s89, %s90
    %p99 = scmp.eq.s32.totalorder %s16, 0
    %p100 = por %p98, %p99
    %p101 = scmp.ne.s32.totalorder %s89, %s90
    %p102 = scmp.eq.s32.totalorder %s17, 1
    %p103 = por %p101, %p102
    %p105 = scmp.ne.s32.totalorder %s90, %s104
    %p106 = scmp.eq.s32.totalorder %s17, 0
    %p107 = por %p105, %p106
    %s109 = sadd.s32 %s108, 1
    %p112 = scmp.eq.s32.totalorder %s11, 1
    %p113 = scmp.ne.s32.totalorder %s108, %s110
    %p114 = scmp.eq.s32.totalorder %s11, 0
    %p115 = por %p113, %p114
    %p116 = scmp.ne.s32.totalorder %s108, %s110
    %p117 = scmp.eq.s32.totalorder %s16, 1
    %p118 = por %p116, %p117
    %p119 = scmp.ne.s32.totalorder %s110, %s111
    %p120 = scmp.eq.s32.totalorder %s16, 0
    %p121 = por %p119, %p120
    %p122 = scmp.ne.s32.totalorder %s110, %s111
    %p123 = scmp.eq.s32.totalorder %s17, 1
    %p124 = por %p122, %p123
    %p126 = scmp.ne.s32.totalorder %s111, %s125
    %p127 = scmp.eq.s32.totalorder %s17, 0
    %p128 = por %p126, %p127
    %s129 = ssub.s32 %s11, %s18
    %p130 = scmp.eq.s32.totalorder %s129, 0
    %s132 = sadd.s32 %s131, 1
    %s133 = scalar_select %p130, %s131, %s132
    %p136 = pneg %p130
    %p137 = scmp.eq.s32.totalorder %s11, 1
    %p138 = por %p136, %p137
    %p139 = scmp.ne.s32.totalorder %s131, %s134
    %p140 = scmp.eq.s32.totalorder %s11, 0
    %p141 = por %p139, %p140
    %p142 = scmp.ne.s32.totalorder %s131, %s134
    %p143 = scmp.eq.s32.totalorder %s16, 1
    %p144 = por %p142, %p143
    %p145 = scmp.ne.s32.totalorder %s134, %s135
    %p146 = scmp.eq.s32.totalorder %s16, 0
    %p147 = por %p145, %p146
    %p148 = scmp.ne.s32.totalorder %s134, %s135
    %p149 = scmp.eq.s32.totalorder %s17, 1
    %p150 = por %p148, %p149
    %p152 = scmp.ne.s32.totalorder %s135, %s151
    %p153 = scmp.eq.s32.totalorder %s17, 0
    %p154 = por %p152, %p153
    %p155 = scmp.le.s32.totalorder 1, %s11
    %p156 = scmp.lt.s32.totalorder %s11, 3
    %p157 = pnand %p155, %p156
    %p158 = pneg %p157
    // Predicated region
    $region9: #{unet_down_forward.1} parent=5 // pred_check
      _
    $region10: #{unet_down_forward.1} parent=5 // pred_check_branch
      %160 = sbr.rel (%p157) target = $region12
    $region11: #{unet_down_forward.1} parent=5 // pred_region
      %s161 = ssub.s32 %s11, 1
      // Predicated region
      $region13: #{unet_down_forward.1} parent=11 // pred_check
        %p162 = pneg %p58
      $region14: #{unet_down_forward.1} parent=11 // pred_check_branch
        %164 = sbr.rel (%p162) target = $region16
      $region15: #{unet_down_forward.1} parent=11 // pred_region
        _
      $region16: #{unet_down_forward.1} parent=11 // pred_fallthru
        _
      // Predicated region
      $region17: #{unet_down_forward.1} parent=11 // pred_check
        %p165 = pneg %p79
      $region18: #{unet_down_forward.1} parent=11 // pred_check_branch
        %167 = sbr.rel (%p165) target = $region20
      $region19: #{unet_down_forward.1} parent=11 // pred_region
        _
      $region20: #{unet_down_forward.1} parent=11 // pred_fallthru
        _
      // Predicated region
      $region21: #{unet_down_forward.1} parent=11 // pred_check
        %p168 = pneg %p100
      $region22: #{unet_down_forward.1} parent=11 // pred_check_branch
        %170 = sbr.rel (%p168) target = $region24
      $region23: #{unet_down_forward.1} parent=11 // pred_region
        _
      $region24: #{unet_down_forward.1} parent=11 // pred_fallthru
        _
      // Predicated region
      $region25: #{unet_down_forward.1} parent=11 // pred_check
        %p171 = pneg %p121
      $region26: #{unet_down_forward.1} parent=11 // pred_check_branch
        %173 = sbr.rel (%p171) target = $region28
      $region27: #{unet_down_forward.1} parent=11 // pred_region
        _
      $region28: #{unet_down_forward.1} parent=11 // pred_fallthru
        _
    $region12: #{unet_down_forward.1} parent=5 // pred_fallthru
      _
    %p174 = scmp.lt.s32.totalorder %s11, 2
    // Predicated region
    $region29: #{unet_down_forward.1} parent=5 // pred_check
      %p175 = pneg %p174
    $region30: #{unet_down_forward.1} parent=5 // pred_check_branch
      %177 = sbr.rel (%p175) target = $region32
    $region31: #{unet_down_forward.1} parent=5 // pred_region
      // Predicated region
      $region33: #{unet_down_forward.1} parent=31 // pred_check
        %p178 = pneg %p31
      $region34: #{unet_down_forward.1} parent=31 // pred_check_branch
        %180 = sbr.rel (%p178) target = $region36
      $region35: #{unet_down_forward.1} parent=31 // pred_region
        %p181 = scmp.lt.s32.totalorder %s11, 1
        %s182 = scalar_select %p181, %s11, 1
        %s183 = smul.addr %s182, 32
        %s184 = smul.addr %s183, 8
        %s185 = scalar_lea.vmem %s0, %s184
      $region36: #{unet_down_forward.1} parent=31 // pred_fallthru
        _
    $region32: #{unet_down_forward.1} parent=5 // pred_fallthru
      _
    %p186 = scmp.le.s32.totalorder 1, %s11
    %p187 = scmp.lt.s32.totalorder %s11, 3
    %p188 = pnand %p186, %p187
    %p189 = pneg %p188
    // Predicated region
    $region37: #{unet_down_forward.1} parent=5 // pred_check
      _
    $region38: #{unet_down_forward.1} parent=5 // pred_check_branch
      %191 = sbr.rel (%p188) target = $region40
    $region39: #{unet_down_forward.1} parent=5 // pred_region
      %s192 = ssub.s32 %s11, 1
      %p193 = scmp.lt.s32.totalorder %s16, 1
      %s194 = scalar_select %p193, %s16, 1
      %s195 = smul.addr %s194, 32
      %s196 = smul.addr %s195, 8
      %s197 = scalar_lea.vmem %s0, %s196
      %p198 = pneg %p37
      %p199 = pneg %p34
      %p200 = pneg %p58
      %p201 = pneg %p55
      %p202 = pneg %p79
      %p203 = pneg %p76
      %p204 = pneg %p100
      %p205 = pneg %p97
      %p206 = pneg %p121
      %p207 = pneg %p118
      %p208 = pneg %p147
      %p209 = pneg %p144
      %p210 = scmp.lt.s32.totalorder %s16, 1
      %s211 = scalar_select %p210, %s16, 1
      %s212 = smul.addr %s211, 8
      %s213 = smul.addr %s212, 8
      %s214 = scalar_lea.vmem %s5, %s213
      %p215 = scmp.lt.s32.totalorder %s16, 1
      %s216 = scalar_select %p215, %s16, 1
      %s217 = smul.addr %s216, 32
      %s218 = smul.addr %s217, 8
      %s219 = scalar_lea.vmem %s0, %s218
      %p220 = scmp.lt.s32.totalorder %s16, 1
      %s221 = scalar_select %p220, %s16, 1
      %s222 = smul.addr %s221, 8
      %s223 = smul.addr %s222, 8
      %s224 = scalar_lea.vmem %s5, %s223
      %v226 = vld [vmem:[%s219] ss:$2 sm:$0xff]
      %s227 = scalar_lea.vmem %s219, 32
      %v228 = vld [vmem:[%s227] ss:$2 sm:$0xff]
      %s229 = scalar_lea.vmem %s219, 64
      %v230 = vld [vmem:[%s229] ss:$2 sm:$0xff]
      %s231 = scalar_lea.vmem %s219, 96
      %v232 = vld [vmem:[%s231] ss:$2 sm:$0xff]
      %s233 = scalar_lea.vmem %s219, 128
      %v234 = vld [vmem:[%s233] ss:$2 sm:$0xff]
      %s235 = scalar_lea.vmem %s219, 160
      %v236 = vld [vmem:[%s235] ss:$2 sm:$0xff]
      %s237 = scalar_lea.vmem %s219, 192
      %v238 = vld [vmem:[%s237] ss:$2 sm:$0xff]
      %s239 = scalar_lea.vmem %s219, 224
      %v240 = vld [vmem:[%s239] ss:$2 sm:$0xff]
      %s241 = scalar_lea.vmem %s219, 1
      %v242 = vld [vmem:[%s241] ss:$2 sm:$0xff]
      %s243 = scalar_lea.vmem %s219, 33
      %v244 = vld [vmem:[%s243] ss:$2 sm:$0xff]
      %s245 = scalar_lea.vmem %s219, 65
      %v246 = vld [vmem:[%s245] ss:$2 sm:$0xff]
      %s247 = scalar_lea.vmem %s219, 97
      %v248 = vld [vmem:[%s247] ss:$2 sm:$0xff]
      %s249 = scalar_lea.vmem %s219, 129
      %v250 = vld [vmem:[%s249] ss:$2 sm:$0xff]
      %s251 = scalar_lea.vmem %s219, 161
      %v252 = vld [vmem:[%s251] ss:$2 sm:$0xff]
      %s253 = scalar_lea.vmem %s219, 193
      %v254 = vld [vmem:[%s253] ss:$2 sm:$0xff]
      %s255 = scalar_lea.vmem %s219, 225
      %v256 = vld [vmem:[%s255] ss:$2 sm:$0xff]
      %s257 = scalar_lea.vmem %s219, 16
      %v258 = vld [vmem:[%s257] ss:$2 sm:$0xff]
      %s259 = scalar_lea.vmem %s257, 32
      %v260 = vld [vmem:[%s259] ss:$2 sm:$0xff]
      %s261 = scalar_lea.vmem %s257, 64
      %v262 = vld [vmem:[%s261] ss:$2 sm:$0xff]
      %s263 = scalar_lea.vmem %s257, 96
      %v264 = vld [vmem:[%s263] ss:$2 sm:$0xff]
      %s265 = scalar_lea.vmem %s257, 128
      %v266 = vld [vmem:[%s265] ss:$2 sm:$0xff]
      %s267 = scalar_lea.vmem %s257, 160
      %v268 = vld [vmem:[%s267] ss:$2 sm:$0xff]
      %s269 = scalar_lea.vmem %s257, 192
      %v270 = vld [vmem:[%s269] ss:$2 sm:$0xff]
      %s271 = scalar_lea.vmem %s257, 224
      %v272 = vld [vmem:[%s271] ss:$2 sm:$0xff]
      %s273 = scalar_lea.vmem %s257, 1
      %v274 = vld [vmem:[%s273] ss:$2 sm:$0xff]
      %s275 = scalar_lea.vmem %s257, 33
      %v276 = vld [vmem:[%s275] ss:$2 sm:$0xff]
      %s277 = scalar_lea.vmem %s257, 65
      %v278 = vld [vmem:[%s277] ss:$2 sm:$0xff]
      %s279 = scalar_lea.vmem %s257, 97
      %v280 = vld [vmem:[%s279] ss:$2 sm:$0xff]
      %s281 = scalar_lea.vmem %s257, 129
      %v282 = vld [vmem:[%s281] ss:$2 sm:$0xff]
      %s283 = scalar_lea.vmem %s257, 161
      %v284 = vld [vmem:[%s283] ss:$2 sm:$0xff]
      %s285 = scalar_lea.vmem %s257, 193
      %v286 = vld [vmem:[%s285] ss:$2 sm:$0xff]
      %s287 = scalar_lea.vmem %s257, 225
      %v288 = vld [vmem:[%s287] ss:$2 sm:$0xff]
      %v289 = vmax.f32 %v226, %v242
      %v290 = vmax.f32 %v228, %v244
      %v291 = vmax.f32 %v230, %v246
      %v292 = vmax.f32 %v232, %v248
      %v293 = vmax.f32 %v234, %v250
      %v294 = vmax.f32 %v236, %v252
      %v295 = vmax.f32 %v238, %v254
      %v296 = vmax.f32 %v240, %v256
      %v297 = vmax.f32 %v258, %v274
      %v298 = vmax.f32 %v260, %v276
      %v299 = vmax.f32 %v262, %v278
      %v300 = vmax.f32 %v264, %v280
      %v301 = vmax.f32 %v266, %v282
      %v302 = vmax.f32 %v268, %v284
      %v303 = vmax.f32 %v270, %v286
      %v304 = vmax.f32 %v272, %v288
      %v305 = vmax.f32 %v289, %v297
      %v306 = vmax.f32 %v290, %v298
      %v307 = vmax.f32 %v291, %v299
      %v308 = vmax.f32 %v292, %v300
      %v309 = vmax.f32 %v293, %v301
      %v310 = vmax.f32 %v294, %v302
      %v311 = vmax.f32 %v295, %v303
      %v312 = vmax.f32 %v296, %v304
      %vm313 = vcmask 31744
      %314 = vst.msk [vmem:[#allocation2] sm:$0xff] %vm313, 0.0
      %vm315 = vcmask 25600
      %316 = vst.msk [vmem:[#allocation2 + $0x8] sm:$0x3] %vm315, 0.0
      %317 = vst.msk [vmem:[#allocation2 + $0x10] sm:$0xff] %vm313, 0.0
      %318 = vst.msk [vmem:[#allocation2 + $0x18] sm:$0x3] %vm315, 0.0
      %319 = vst.msk [vmem:[#allocation2 + $0x20] sm:$0xff] %vm313, 0.0
      %320 = vst.msk [vmem:[#allocation2 + $0x28] sm:$0x3] %vm315, 0.0
      %321 = vst.msk [vmem:[#allocation2 + $0x30] sm:$0xff] %vm313, 0.0
      %322 = vst.msk [vmem:[#allocation2 + $0x38] sm:$0x3] %vm315, 0.0
      %323 = vst.msk [vmem:[#allocation2 + $0x40] sm:$0xff] %vm313, 0.0
      %324 = vst.msk [vmem:[#allocation2 + $0x48] sm:$0x3] %vm315, 0.0
      %325 = vst.msk [vmem:[#allocation2 + $0x50] sm:$0xff] %vm313, 0.0
      %326 = vst.msk [vmem:[#allocation2 + $0x58] sm:$0x3] %vm315, 0.0
      %327 = vst.msk [vmem:[#allocation2 + $0x60] sm:$0xff] %vm313, 0.0
      %328 = vst.msk [vmem:[#allocation2 + $0x68] sm:$0x3] %vm315, 0.0
      %329 = vst.msk [vmem:[#allocation2 + $0x70] sm:$0xff] %vm313, 0.0
      %330 = vst.msk [vmem:[#allocation2 + $0x78] sm:$0x3] %vm315, 0.0
      %331 = vst.msk [vmem:[#allocation2 + $0x80] sm:$0xff] %vm313, 0.0
      %332 = vst.msk [vmem:[#allocation2 + $0x88] sm:$0x3] %vm315, 0.0
      %333 = vst.msk [vmem:[#allocation2 + $0x90] sm:$0xff] %vm313, 0.0
      %334 = vst.msk [vmem:[#allocation2 + $0x98] sm:$0x3] %vm315, 0.0
      %s335 = scalar_lea.vmem [#allocation2], 16
      %336 = vst.msk [vmem:[%s335 + $0x1] sm:$0xff] %vm313, %v305
      %337 = vst.msk [vmem:[%s335 + $0x11] sm:$0xff] %vm313, %v306
      %338 = vst.msk [vmem:[%s335 + $0x21] sm:$0xff] %vm313, %v307
      %339 = vst.msk [vmem:[%s335 + $0x31] sm:$0xff] %vm313, %v308
      %340 = vst.msk [vmem:[%s335 + $0x41] sm:$0xff] %vm313, %v309
      %341 = vst.msk [vmem:[%s335 + $0x51] sm:$0xff] %vm313, %v310
      %342 = vst.msk [vmem:[%s335 + $0x61] sm:$0xff] %vm313, %v311
      %343 = vst.msk [vmem:[%s335 + $0x71] sm:$0xff] %vm313, %v312
      %v344 = vld [vmem:[#allocation2] sm:$0xff]
      %v345 = vld [vmem:[#allocation2 + $0x10] sm:$0xff]
      %v346 = vld [vmem:[#allocation2 + $0x20] sm:$0xff]
      %v347 = vld [vmem:[#allocation2 + $0x30] sm:$0xff]
      %v348 = vld [vmem:[#allocation2 + $0x40] sm:$0xff]
      %v349 = vld [vmem:[#allocation2 + $0x50] sm:$0xff]
      %v350 = vld [vmem:[#allocation2 + $0x60] sm:$0xff]
      %v351 = vld [vmem:[#allocation2 + $0x70] sm:$0xff]
      %v352 = vpack.c.bf16 %v345, %v344
      %v353 = vpack.c.bf16 %v347, %v346
      %v354 = vpack.c.bf16 %v349, %v348
      %v355 = vpack.c.bf16 %v351, %v350
      %356 = vst.msk [vmem:[#allocation3] sm:$0xff] %vm313, %v352
      %357 = vst.msk [vmem:[#allocation3 + $0x8] sm:$0xff] %vm313, %v353
      %358 = vst.msk [vmem:[#allocation3 + $0x10] sm:$0xff] %vm313, %v354
      %359 = vst.msk [vmem:[#allocation3 + $0x18] sm:$0xff] %vm313, %v355
      %v360 = vld [vmem:[#allocation2 + $0x1] sm:$0xff]
      %v361 = vld [vmem:[#allocation2 + $0x11] sm:$0xff]
      %v362 = vld [vmem:[#allocation2 + $0x21] sm:$0xff]
      %v363 = vld [vmem:[#allocation2 + $0x31] sm:$0xff]
      %v364 = vld [vmem:[#allocation2 + $0x41] sm:$0xff]
      %v365 = vld [vmem:[#allocation2 + $0x51] sm:$0xff]
      %v366 = vld [vmem:[#allocation2 + $0x61] sm:$0xff]
      %v367 = vld [vmem:[#allocation2 + $0x71] sm:$0xff]
      %v368 = vpack.c.bf16 %v361, %v360
      %v369 = vpack.c.bf16 %v363, %v362
      %v370 = vpack.c.bf16 %v365, %v364
      %v371 = vpack.c.bf16 %v367, %v366
      %376 = vrot.lane.b32.xlu0 %v368, 4
      %v377 = vpop.permute.xlu0 %376
      %378 = vrot.lane.b32.xlu0 %v369, 4
      %v379 = vpop.permute.xlu0 %378
      %380 = vrot.lane.b32.xlu0 %v370, 4
      %v381 = vpop.permute.xlu0 %380
      %382 = vrot.lane.b32.xlu0 %v371, 4
      %v383 = vpop.permute.xlu0 %382
      %vm388 = vcmask 64544
      %389 = vst.msk [vmem:[#allocation3] sm:$0xff] %vm388, %v377
      %390 = vst.msk [vmem:[#allocation3 + $0x8] sm:$0xff] %vm388, %v379
      %391 = vst.msk [vmem:[#allocation3 + $0x10] sm:$0xff] %vm388, %v381
      %392 = vst.msk [vmem:[#allocation3 + $0x18] sm:$0xff] %vm388, %v383
      %v393 = vld [vmem:[#allocation2 + $0x2] sm:$0xff]
      %v394 = vld [vmem:[#allocation2 + $0x12] sm:$0xff]
      %v395 = vld [vmem:[#allocation2 + $0x22] sm:$0xff]
      %v396 = vld [vmem:[#allocation2 + $0x32] sm:$0xff]
      %v397 = vld [vmem:[#allocation2 + $0x42] sm:$0xff]
      %v398 = vld [vmem:[#allocation2 + $0x52] sm:$0xff]
      %v399 = vld [vmem:[#allocation2 + $0x62] sm:$0xff]
      %v400 = vld [vmem:[#allocation2 + $0x72] sm:$0xff]
      %v401 = vpack.c.bf16 %v394, %v393
      %v402 = vpack.c.bf16 %v396, %v395
      %v403 = vpack.c.bf16 %v398, %v397
      %v404 = vpack.c.bf16 %v400, %v399
      %409 = vrot.lane.b32.xlu0 %v401, 8
      %v410 = vpop.permute.xlu0 %409
      %411 = vrot.lane.b32.xlu0 %v402, 8
      %v412 = vpop.permute.xlu0 %411
      %413 = vrot.lane.b32.xlu0 %v403, 8
      %v414 = vpop.permute.xlu0 %413
      %415 = vrot.lane.b32.xlu0 %v404, 8
      %v416 = vpop.permute.xlu0 %415
      %vm421 = vcmask 97344
      %422 = vst.msk [vmem:[#allocation3] sm:$0xff] %vm421, %v410
      %423 = vst.msk [vmem:[#allocation3 + $0x8] sm:$0xff] %vm421, %v412
      %424 = vst.msk [vmem:[#allocation3 + $0x10] sm:$0xff] %vm421, %v414
      %425 = vst.msk [vmem:[#allocation3 + $0x18] sm:$0xff] %vm421, %v416
      %v426 = vld [vmem:[%s335] sm:$0xff]
      %v427 = vld [vmem:[%s335 + $0x10] sm:$0xff]
      %v428 = vld [vmem:[%s335 + $0x20] sm:$0xff]
      %v429 = vld [vmem:[%s335 + $0x30] sm:$0xff]
      %v430 = vld [vmem:[%s335 + $0x40] sm:$0xff]
      %v431 = vld [vmem:[%s335 + $0x50] sm:$0xff]
      %v432 = vld [vmem:[%s335 + $0x60] sm:$0xff]
      %v433 = vld [vmem:[%s335 + $0x70] sm:$0xff]
      %v434 = vpack.c.bf16 %v427, %v426
      %v435 = vpack.c.bf16 %v429, %v428
      %v436 = vpack.c.bf16 %v431, %v430
      %v437 = vpack.c.bf16 %v433, %v432
      %442 = vrot.lane.b32.xlu0 %v434, 12
      %v443 = vpop.permute.xlu0 %442
      %444 = vrot.lane.b32.xlu0 %v435, 12
      %v445 = vpop.permute.xlu0 %444
      %446 = vrot.lane.b32.xlu0 %v436, 12
      %v447 = vpop.permute.xlu0 %446
      %448 = vrot.lane.b32.xlu0 %v437, 12
      %v449 = vpop.permute.xlu0 %448
      %vm454 = vcmask 130144
      %455 = vst.msk [vmem:[#allocation3] sm:$0xff] %vm454, %v443
      %456 = vst.msk [vmem:[#allocation3 + $0x8] sm:$0xff] %vm454, %v445
      %457 = vst.msk [vmem:[#allocation3 + $0x10] sm:$0xff] %vm454, %v447
      %458 = vst.msk [vmem:[#allocation3 + $0x18] sm:$0xff] %vm454, %v449
      %v459 = vld [vmem:[%s335 + $0x1] sm:$0xff]
      %v460 = vld [vmem:[%s335 + $0x11] sm:$0xff]
      %v461 = vld [vmem:[%s335 + $0x21] sm:$0xff]
      %v462 = vld [vmem:[%s335 + $0x31] sm:$0xff]
      %v463 = vld [vmem:[%s335 + $0x41] sm:$0xff]
      %v464 = vld [vmem:[%s335 + $0x51] sm:$0xff]
      %v465 = vld [vmem:[%s335 + $0x61] sm:$0xff]
      %v466 = vld [vmem:[%s335 + $0x71] sm:$0xff]
      %v467 = vpack.c.bf16 %v460, %v459
      %v468 = vpack.c.bf16 %v462, %v461
      %v469 = vpack.c.bf16 %v464, %v463
      %v470 = vpack.c.bf16 %v466, %v465
      %475 = vrot.lane.b32.xlu0 %v467, 16
      %v476 = vpop.permute.xlu0 %475
      %477 = vrot.lane.b32.xlu0 %v468, 16
      %v478 = vpop.permute.xlu0 %477
      %479 = vrot.lane.b32.xlu0 %v469, 16
      %v480 = vpop.permute.xlu0 %479
      %481 = vrot.lane.b32.xlu0 %v470, 16
      %v482 = vpop.permute.xlu0 %481
      %vm487 = vcmask 162944
      %488 = vst.msk [vmem:[#allocation3] sm:$0xff] %vm487, %v476
      %489 = vst.msk [vmem:[#allocation3 + $0x8] sm:$0xff] %vm487, %v478
      %490 = vst.msk [vmem:[#allocation3 + $0x10] sm:$0xff] %vm487, %v480
      %491 = vst.msk [vmem:[#allocation3 + $0x18] sm:$0xff] %vm487, %v482
      %v492 = vld [vmem:[%s335 + $0x2] sm:$0xff]
      %v493 = vld [vmem:[%s335 + $0x12] sm:$0xff]
      %v494 = vld [vmem:[%s335 + $0x22] sm:$0xff]
      %v495 = vld [vmem:[%s335 + $0x32] sm:$0xff]
      %v496 = vld [vmem:[%s335 + $0x42] sm:$0xff]
      %v497 = vld [vmem:[%s335 + $0x52] sm:$0xff]
      %v498 = vld [vmem:[%s335 + $0x62] sm:$0xff]
      %v499 = vld [vmem:[%s335 + $0x72] sm:$0xff]
      %v500 = vpack.c.bf16 %v493, %v492
      %v501 = vpack.c.bf16 %v495, %v494
      %v502 = vpack.c.bf16 %v497, %v496
      %v503 = vpack.c.bf16 %v499, %v498
      %508 = vrot.lane.b32.xlu0 %v500, 20
      %v509 = vpop.permute.xlu0 %508
      %510 = vrot.lane.b32.xlu0 %v501, 20
      %v511 = vpop.permute.xlu0 %510
      %512 = vrot.lane.b32.xlu0 %v502, 20
      %v513 = vpop.permute.xlu0 %512
      %514 = vrot.lane.b32.xlu0 %v503, 20
      %v515 = vpop.permute.xlu0 %514
      %vm520 = vcmask 195744
      %521 = vst.msk [vmem:[#allocation3] sm:$0xff] %vm520, %v509
      %522 = vst.msk [vmem:[#allocation3 + $0x8] sm:$0xff] %vm520, %v511
      %523 = vst.msk [vmem:[#allocation3 + $0x10] sm:$0xff] %vm520, %v513
      %524 = vst.msk [vmem:[#allocation3 + $0x18] sm:$0xff] %vm520, %v515
      %s525 = scalar_lea.vmem [#allocation2], 32
      %v526 = vld [vmem:[%s525] sm:$0xff]
      %v527 = vld [vmem:[%s525 + $0x10] sm:$0xff]
      %v528 = vld [vmem:[%s525 + $0x20] sm:$0xff]
      %v529 = vld [vmem:[%s525 + $0x30] sm:$0xff]
      %v530 = vld [vmem:[%s525 + $0x40] sm:$0xff]
      %v531 = vld [vmem:[%s525 + $0x50] sm:$0xff]
      %v532 = vld [vmem:[%s525 + $0x60] sm:$0xff]
      %v533 = vld [vmem:[%s525 + $0x70] sm:$0xff]
      %v534 = vpack.c.bf16 %v527, %v526
      %v535 = vpack.c.bf16 %v529, %v528
      %v536 = vpack.c.bf16 %v531, %v530
      %v537 = vpack.c.bf16 %v533, %v532
      %542 = vrot.lane.b32.xlu0 %v534, 24
      %v543 = vpop.permute.xlu0 %542
      %544 = vrot.lane.b32.xlu0 %v535, 24
      %v545 = vpop.permute.xlu0 %544
      %546 = vrot.lane.b32.xlu0 %v536, 24
      %v547 = vpop.permute.xlu0 %546
      %548 = vrot.lane.b32.xlu0 %v537, 24
      %v549 = vpop.permute.xlu0 %548
      %vm554 = vcmask 228544
      %555 = vst.msk [vmem:[#allocation3] sm:$0xff] %vm554, %v543
      %556 = vst.msk [vmem:[#allocation3 + $0x8] sm:$0xff] %vm554, %v545
      %557 = vst.msk [vmem:[#allocation3 + $0x10] sm:$0xff] %vm554, %v547
      %558 = vst.msk [vmem:[#allocation3 + $0x18] sm:$0xff] %vm554, %v549
      %v559 = vld [vmem:[%s525 + $0x1] sm:$0xff]
      %v560 = vld [vmem:[%s525 + $0x11] sm:$0xff]
      %v561 = vld [vmem:[%s525 + $0x21] sm:$0xff]
      %v562 = vld [vmem:[%s525 + $0x31] sm:$0xff]
      %v563 = vld [vmem:[%s525 + $0x41] sm:$0xff]
      %v564 = vld [vmem:[%s525 + $0x51] sm:$0xff]
      %v565 = vld [vmem:[%s525 + $0x61] sm:$0xff]
      %v566 = vld [vmem:[%s525 + $0x71] sm:$0xff]
      %v567 = vpack.c.bf16 %v560, %v559
      %v568 = vpack.c.bf16 %v562, %v561
      %v569 = vpack.c.bf16 %v564, %v563
      %v570 = vpack.c.bf16 %v566, %v565
      %575 = vrot.lane.b32.xlu0 %v567, 28
      %v576 = vpop.permute.xlu0 %575
      %577 = vrot.lane.b32.xlu0 %v568, 28
      %v578 = vpop.permute.xlu0 %577
      %579 = vrot.lane.b32.xlu0 %v569, 28
      %v580 = vpop.permute.xlu0 %579
      %581 = vrot.lane.b32.xlu0 %v570, 28
      %v582 = vpop.permute.xlu0 %581
      %vm587 = vcmask 261344
      %588 = vst.msk [vmem:[#allocation3] sm:$0xff] %vm587, %v576
      %589 = vst.msk [vmem:[#allocation3 + $0x8] sm:$0xff] %vm587, %v578
      %590 = vst.msk [vmem:[#allocation3 + $0x10] sm:$0xff] %vm587, %v580
      %591 = vst.msk [vmem:[#allocation3 + $0x18] sm:$0xff] %vm587, %v582
      %v592 = vld [vmem:[%s525 + $0x2] sm:$0xff]
      %v593 = vld [vmem:[%s525 + $0x12] sm:$0xff]
      %v594 = vld [vmem:[%s525 + $0x22] sm:$0xff]
      %v595 = vld [vmem:[%s525 + $0x32] sm:$0xff]
      %v596 = vld [vmem:[%s525 + $0x42] sm:$0xff]
      %v597 = vld [vmem:[%s525 + $0x52] sm:$0xff]
      %v598 = vld [vmem:[%s525 + $0x62] sm:$0xff]
      %v599 = vld [vmem:[%s525 + $0x72] sm:$0xff]
      %v600 = vpack.c.bf16 %v593, %v592
      %v601 = vpack.c.bf16 %v595, %v594
      %v602 = vpack.c.bf16 %v597, %v596
      %v603 = vpack.c.bf16 %v599, %v598
      %608 = vrot.lane.b32.xlu0 %v600, 32
      %v609 = vpop.permute.xlu0 %608
      %610 = vrot.lane.b32.xlu0 %v601, 32
      %v611 = vpop.permute.xlu0 %610
      %612 = vrot.lane.b32.xlu0 %v602, 32
      %v613 = vpop.permute.xlu0 %612
      %614 = vrot.lane.b32.xlu0 %v603, 32
      %v615 = vpop.permute.xlu0 %614
      %vm620 = vcmask 294144
      %621 = vst.msk [vmem:[#allocation3] sm:$0xff] %vm620, %v609
      %622 = vst.msk [vmem:[#allocation3 + $0x8] sm:$0xff] %vm620, %v611
      %623 = vst.msk [vmem:[#allocation3 + $0x10] sm:$0xff] %vm620, %v613
      %624 = vst.msk [vmem:[#allocation3 + $0x18] sm:$0xff] %vm620, %v615
      %v625 = vld [vmem:[#allocation3] sm:$0xff]
      %v626 = vld [vmem:[#allocation3 + $0x8] sm:$0xff]
      %v627 = vld [vmem:[#allocation3 + $0x10] sm:$0xff]
      %v628 = vld [vmem:[#allocation3 + $0x18] sm:$0xff]
      %v629 = vld [vmem:[%s1] sm:$0xf]
      %v630 = vld [vmem:[%s1 + $0x4] sm:$0xf]
      %v631 = vld [vmem:[%s1 + $0x8] sm:$0xf]
      %v632 = vld [vmem:[%s1 + $0xc] sm:$0xf]
      %v633 = vld [vmem:[%s1 + $0x10] sm:$0x3]
      %v634 = vld [vmem:[%s2] sm:$0x1]
      %v636 = vlaneseq
      %v637 = vshrl.u32 %v636, 7
      %v638 = vsub.s32 0, %v637
      %v639 = vrot.slane %v634, %v638
      %v646 = vunpack.c.l.b16 %v629
      %v647 = vunpack.c.l.b16 %v630
      %v648 = vunpack.c.l.b16 %v631
      %v649 = vunpack.c.l.b16 %v632
      %v650 = vunpack.c.l.b16 %v633
      %v651 = vpack.c.b16 %v647, %v646
      %v652 = vpack.c.b16 %v649, %v648
      %v653 = vpack.c.b16 %v650, %v650
      %vm656 = vcmask 293888
      %v658 = vsel %vm656, %v625, 0
      %v661 = vsel %vm656, %v626, 0
      %v664 = vsel %vm656, %v627, 0
      %v667 = vsel %vm656, %v628, 0
      %vm669 = vcmask 1041408
      %v671 = vsel %vm669, %v653, 0
      %673 = vmatprep.subr.bf16.mxu0 0
      %674 = vmatpush1.bf16.msra.mxu0 %v651
      %675 = vmatprep.subr.bf16.mxu0 0
      %676 = vmatpush1.bf16.msra.mxu0 %v652
      %677 = vmatprep.subr.bf16.mxu0 0
      %678 = vmatpush1.bf16.msra.mxu0 %v671
      %679 = vmatprep.subr.bf16.mxu0 0
      %680 = vmatpush1.bf16.msra.mxu0 0
      %681 = vmatprep.subr.bf16.mxu0 0
      %682 = vmatpush1.bf16.msra.mxu0 0
      %683 = vmatprep.subr.bf16.mxu0 0
      %684 = vmatpush1.bf16.msra.mxu0 0
      %685 = vmatprep.subr.bf16.mxu0 0
      %686 = vmatpush1.bf16.msra.mxu0 0
      %687 = vmatprep.subr.bf16.mxu0 0
      %688 = vmatpush1.bf16.msra.mxu0 0
      %689 = vmatprep.subr.bf16.mxu0 0
      %690 = vmatpush1.bf16.msra.mxu0 0
      %691 = vmatprep.subr.bf16.mxu0 0
      %692 = vmatpush1.bf16.msra.mxu0 0
      %693 = vmatprep.subr.bf16.mxu0 0
      %694 = vmatpush1.bf16.msra.mxu0 0
      %695 = vmatprep.subr.bf16.mxu0 0
      %696 = vmatpush1.bf16.msra.mxu0 0
      %697 = vmatprep.subr.bf16.mxu0 0
      %698 = vmatpush1.bf16.msra.mxu0 0
      %699 = vmatprep.subr.bf16.mxu0 0
      %700 = vmatpush1.bf16.msra.mxu0 0
      %701 = vmatprep.subr.bf16.mxu0 0
      %702 = vmatpush1.bf16.msra.mxu0 0
      %703 = vmatprep.subr.bf16.mxu0 0
      %704 = vmatpush1.bf16.msra.mxu0 0
      %705 = vmatprep.mubr.bf16.mxu0 0
      %706 = vmatmul.mubr.bf16.gmra.mrb[0].mxu0 %v658
      %v707 = vpop.f32.mrb[0].mxu0
      %v708 = vadd.f32 %v639, %v707
      %v709 = vpop.f32.mrb[0].mxu0
      %v710 = vpop.f32.mrb[0].mxu0
      %v711 = vadd.f32 %v639, %v710
      %v712 = vpop.f32.mrb[0].mxu0
      %713 = vmatprep.mubr.bf16.mxu0 0
      %714 = vmatmul.mubr.bf16.gmra.mrb[0].mxu0 %v661
      %v715 = vpop.f32.mrb[0].mxu0
      %v716 = vadd.f32 %v639, %v715
      %v717 = vpop.f32.mrb[0].mxu0
      %v718 = vpop.f32.mrb[0].mxu0
      %v719 = vadd.f32 %v639, %v718
      %v720 = vpop.f32.mrb[0].mxu0
      %721 = vmatprep.mubr.bf16.mxu0 0
      %722 = vmatmul.mubr.bf16.gmra.mrb[0].mxu0 %v664
      %v723 = vpop.f32.mrb[0].mxu0
      %v724 = vadd.f32 %v639, %v723
      %v725 = vpop.f32.mrb[0].mxu0
      %v726 = vpop.f32.mrb[0].mxu0
      %v727 = vadd.f32 %v639, %v726
      %v728 = vpop.f32.mrb[0].mxu0
      %729 = vmatprep.mubr.bf16.mxu0 0
      %730 = vmatmul.mubr.bf16.gmra.mrb[0].mxu0 %v667
      %v731 = vpop.f32.mrb[0].mxu0
      %v732 = vadd.f32 %v639, %v731
      %v733 = vpop.f32.mrb[0].mxu0
      %v734 = vpop.f32.mrb[0].mxu0
      %v735 = vadd.f32 %v639, %v734
      %v736 = vpop.f32.mrb[0].mxu0
      %737 = vdwg.mxu0
      %v738 = vmax.f32 %v708, 0.0
      %v739 = vmax.f32 %v711, 0.0
      %v740 = vmax.f32 %v716, 0.0
      %v741 = vmax.f32 %v719, 0.0
      %v742 = vmax.f32 %v724, 0.0
      %v743 = vmax.f32 %v727, 0.0
      %v744 = vmax.f32 %v732, 0.0
      %v745 = vmax.f32 %v735, 0.0
      %vm746 = vcmask 64512
      %747 = vst.msk [vmem:[#allocation4] sm:$0xff] %vm746, 0.0
      %vm748 = vcmask 58368
      %749 = vst.msk [vmem:[#allocation4 + $0x8] sm:$0x3] %vm748, 0.0
      %750 = vst.msk [vmem:[#allocation4 + $0x10] sm:$0xff] %vm746, 0.0
      %751 = vst.msk [vmem:[#allocation4 + $0x18] sm:$0x3] %vm748, 0.0
      %752 = vst.msk [vmem:[#allocation4 + $0x20] sm:$0xff] %vm746, 0.0
      %753 = vst.msk [vmem:[#allocation4 + $0x28] sm:$0x3] %vm748, 0.0
      %754 = vst.msk [vmem:[#allocation4 + $0x30] sm:$0xff] %vm746, 0.0
      %755 = vst.msk [vmem:[#allocation4 + $0x38] sm:$0x3] %vm748, 0.0
      %756 = vst.msk [vmem:[#allocation4 + $0x40] sm:$0xff] %vm746, 0.0
      %757 = vst.msk [vmem:[#allocation4 + $0x48] sm:$0x3] %vm748, 0.0
      %758 = vst.msk [vmem:[#allocation4 + $0x50] sm:$0xff] %vm746, 0.0
      %759 = vst.msk [vmem:[#allocation4 + $0x58] sm:$0x3] %vm748, 0.0
      %760 = vst.msk [vmem:[#allocation4 + $0x60] sm:$0xff] %vm746, 0.0
      %761 = vst.msk [vmem:[#allocation4 + $0x68] sm:$0x3] %vm748, 0.0
      %762 = vst.msk [vmem:[#allocation4 + $0x70] sm:$0xff] %vm746, 0.0
      %763 = vst.msk [vmem:[#allocation4 + $0x78] sm:$0x3] %vm748, 0.0
      %764 = vst.msk [vmem:[#allocation4 + $0x80] sm:$0xff] %vm746, 0.0
      %765 = vst.msk [vmem:[#allocation4 + $0x88] sm:$0x3] %vm748, 0.0
      %766 = vst.msk [vmem:[#allocation4 + $0x90] sm:$0xff] %vm746, 0.0
      %767 = vst.msk [vmem:[#allocation4 + $0x98] sm:$0x3] %vm748, 0.0
      %s768 = scalar_lea.vmem [#allocation4], 16
      %769 = vst.msk [vmem:[%s768 + $0x1] sm:$0xff] %vm746, %v738
      %770 = vst.msk [vmem:[%s768 + $0x11] sm:$0xff] %vm746, %v739
      %771 = vst.msk [vmem:[%s768 + $0x21] sm:$0xff] %vm746, %v740
      %772 = vst.msk [vmem:[%s768 + $0x31] sm:$0xff] %vm746, %v741
      %773 = vst.msk [vmem:[%s768 + $0x41] sm:$0xff] %vm746, %v742
      %774 = vst.msk [vmem:[%s768 + $0x51] sm:$0xff] %vm746, %v743
      %775 = vst.msk [vmem:[%s768 + $0x61] sm:$0xff] %vm746, %v744
      %776 = vst.msk [vmem:[%s768 + $0x71] sm:$0xff] %vm746, %v745
      %v777 = vld [vmem:[#allocation4] sm:$0xff]
      %v778 = vld [vmem:[#allocation4 + $0x10] sm:$0xff]
      %v779 = vld [vmem:[#allocation4 + $0x20] sm:$0xff]
      %v780 = vld [vmem:[#allocation4 + $0x30] sm:$0xff]
      %v781 = vld [vmem:[#allocation4 + $0x40] sm:$0xff]
      %v782 = vld [vmem:[#allocation4 + $0x50] sm:$0xff]
      %v783 = vld [vmem:[#allocation4 + $0x60] sm:$0xff]
      %v784 = vld [vmem:[#allocation4 + $0x70] sm:$0xff]
      %v785 = vpack.c.bf16 %v778, %v777
      %v786 = vpack.c.bf16 %v780, %v779
      %v787 = vpack.c.bf16 %v782, %v781
      %v788 = vpack.c.bf16 %v784, %v783
      %789 = vst.msk [vmem:[#allocation5] sm:$0xff] %vm746, %v785
      %790 = vst.msk [vmem:[#allocation5 + $0x8] sm:$0xff] %vm746, %v786
      %791 = vst.msk [vmem:[#allocation5 + $0x10] sm:$0xff] %vm746, %v787
      %792 = vst.msk [vmem:[#allocation5 + $0x18] sm:$0xff] %vm746, %v788
      %v793 = vld [vmem:[#allocation4 + $0x1] sm:$0xff]
      %v794 = vld [vmem:[#allocation4 + $0x11] sm:$0xff]
      %v795 = vld [vmem:[#allocation4 + $0x21] sm:$0xff]
      %v796 = vld [vmem:[#allocation4 + $0x31] sm:$0xff]
      %v797 = vld [vmem:[#allocation4 + $0x41] sm:$0xff]
      %v798 = vld [vmem:[#allocation4 + $0x51] sm:$0xff]
      %v799 = vld [vmem:[#allocation4 + $0x61] sm:$0xff]
      %v800 = vld [vmem:[#allocation4 + $0x71] sm:$0xff]
      %v801 = vpack.c.bf16 %v794, %v793
      %v802 = vpack.c.bf16 %v796, %v795
      %v803 = vpack.c.bf16 %v798, %v797
      %v804 = vpack.c.bf16 %v800, %v799
      %809 = vrot.lane.b32.xlu0 %v801, 8
      %v810 = vpop.permute.xlu0 %809
      %811 = vrot.lane.b32.xlu0 %v802, 8
      %v812 = vpop.permute.xlu0 %811
      %813 = vrot.lane.b32.xlu0 %v803, 8
      %v814 = vpop.permute.xlu0 %813
      %815 = vrot.lane.b32.xlu0 %v804, 8
      %v816 = vpop.permute.xlu0 %815
      %vm821 = vcmask 130112
      %822 = vst.msk [vmem:[#allocation5] sm:$0xff] %vm821, %v810
      %823 = vst.msk [vmem:[#allocation5 + $0x8] sm:$0xff] %vm821, %v812
      %824 = vst.msk [vmem:[#allocation5 + $0x10] sm:$0xff] %vm821, %v814
      %825 = vst.msk [vmem:[#allocation5 + $0x18] sm:$0xff] %vm821, %v816
      %v826 = vld [vmem:[#allocation4 + $0x2] sm:$0xff]
      %v827 = vld [vmem:[#allocation4 + $0x12] sm:$0xff]
      %v828 = vld [vmem:[#allocation4 + $0x22] sm:$0xff]
      %v829 = vld [vmem:[#allocation4 + $0x32] sm:$0xff]
      %v830 = vld [vmem:[#allocation4 + $0x42] sm:$0xff]
      %v831 = vld [vmem:[#allocation4 + $0x52] sm:$0xff]
      %v832 = vld [vmem:[#allocation4 + $0x62] sm:$0xff]
      %v833 = vld [vmem:[#allocation4 + $0x72] sm:$0xff]
      %v834 = vpack.c.bf16 %v827, %v826
      %v835 = vpack.c.bf16 %v829, %v828
      %v836 = vpack.c.bf16 %v831, %v830
      %v837 = vpack.c.bf16 %v833, %v832
      %842 = vrot.lane.b32.xlu0 %v834, 16
      %v843 = vpop.permute.xlu0 %842
      %844 = vrot.lane.b32.xlu0 %v835, 16
      %v845 = vpop.permute.xlu0 %844
      %846 = vrot.lane.b32.xlu0 %v836, 16
      %v847 = vpop.permute.xlu0 %846
      %848 = vrot.lane.b32.xlu0 %v837, 16
      %v849 = vpop.permute.xlu0 %848
      %vm854 = vcmask 195712
      %855 = vst.msk [vmem:[#allocation5] sm:$0xff] %vm854, %v843
      %856 = vst.msk [vmem:[#allocation5 + $0x8] sm:$0xff] %vm854, %v845
      %857 = vst.msk [vmem:[#allocation5 + $0x10] sm:$0xff] %vm854, %v847
      %858 = vst.msk [vmem:[#allocation5 + $0x18] sm:$0xff] %vm854, %v849
      %v859 = vld [vmem:[%s768] sm:$0xff]
      %v860 = vld [vmem:[%s768 + $0x10] sm:$0xff]
      %v861 = vld [vmem:[%s768 + $0x20] sm:$0xff]
      %v862 = vld [vmem:[%s768 + $0x30] sm:$0xff]
      %v863 = vld [vmem:[%s768 + $0x40] sm:$0xff]
      %v864 = vld [vmem:[%s768 + $0x50] sm:$0xff]
      %v865 = vld [vmem:[%s768 + $0x60] sm:$0xff]
      %v866 = vld [vmem:[%s768 + $0x70] sm:$0xff]
      %v867 = vpack.c.bf16 %v860, %v859
      %v868 = vpack.c.bf16 %v862, %v861
      %v869 = vpack.c.bf16 %v864, %v863
      %v870 = vpack.c.bf16 %v866, %v865
      %875 = vrot.lane.b32.xlu0 %v867, 24
      %v876 = vpop.permute.xlu0 %875
      %877 = vrot.lane.b32.xlu0 %v868, 24
      %v878 = vpop.permute.xlu0 %877
      %879 = vrot.lane.b32.xlu0 %v869, 24
      %v880 = vpop.permute.xlu0 %879
      %881 = vrot.lane.b32.xlu0 %v870, 24
      %v882 = vpop.permute.xlu0 %881
      %vm887 = vcmask 261312
      %888 = vst.msk [vmem:[#allocation5] sm:$0xff] %vm887, %v876
      %889 = vst.msk [vmem:[#allocation5 + $0x8] sm:$0xff] %vm887, %v878
      %890 = vst.msk [vmem:[#allocation5 + $0x10] sm:$0xff] %vm887, %v880
      %891 = vst.msk [vmem:[#allocation5 + $0x18] sm:$0xff] %vm887, %v882
      %v892 = vld [vmem:[%s768 + $0x1] sm:$0xff]
      %v893 = vld [vmem:[%s768 + $0x11] sm:$0xff]
      %v894 = vld [vmem:[%s768 + $0x21] sm:$0xff]
      %v895 = vld [vmem:[%s768 + $0x31] sm:$0xff]
      %v896 = vld [vmem:[%s768 + $0x41] sm:$0xff]
      %v897 = vld [vmem:[%s768 + $0x51] sm:$0xff]
      %v898 = vld [vmem:[%s768 + $0x61] sm:$0xff]
      %v899 = vld [vmem:[%s768 + $0x71] sm:$0xff]
      %v900 = vpack.c.bf16 %v893, %v892
      %v901 = vpack.c.bf16 %v895, %v894
      %v902 = vpack.c.bf16 %v897, %v896
      %v903 = vpack.c.bf16 %v899, %v898
      %908 = vrot.lane.b32.xlu0 %v900, 32
      %v909 = vpop.permute.xlu0 %908
      %910 = vrot.lane.b32.xlu0 %v901, 32
      %v911 = vpop.permute.xlu0 %910
      %912 = vrot.lane.b32.xlu0 %v902, 32
      %v913 = vpop.permute.xlu0 %912
      %914 = vrot.lane.b32.xlu0 %v903, 32
      %v915 = vpop.permute.xlu0 %914
      %vm920 = vcmask 326912
      %921 = vst.msk [vmem:[#allocation5] sm:$0xff] %vm920, %v909
      %922 = vst.msk [vmem:[#allocation5 + $0x8] sm:$0xff] %vm920, %v911
      %923 = vst.msk [vmem:[#allocation5 + $0x10] sm:$0xff] %vm920, %v913
      %924 = vst.msk [vmem:[#allocation5 + $0x18] sm:$0xff] %vm920, %v915
      %v925 = vld [vmem:[%s768 + $0x2] sm:$0xff]
      %v926 = vld [vmem:[%s768 + $0x12] sm:$0xff]
      %v927 = vld [vmem:[%s768 + $0x22] sm:$0xff]
      %v928 = vld [vmem:[%s768 + $0x32] sm:$0xff]
      %v929 = vld [vmem:[%s768 + $0x42] sm:$0xff]
      %v930 = vld [vmem:[%s768 + $0x52] sm:$0xff]
      %v931 = vld [vmem:[%s768 + $0x62] sm:$0xff]
      %v932 = vld [vmem:[%s768 + $0x72] sm:$0xff]
      %v933 = vpack.c.bf16 %v926, %v925
      %v934 = vpack.c.bf16 %v928, %v927
      %v935 = vpack.c.bf16 %v930, %v929
      %v936 = vpack.c.bf16 %v932, %v931
      %941 = vrot.lane.b32.xlu0 %v933, 40
      %v942 = vpop.permute.xlu0 %941
      %943 = vrot.lane.b32.xlu0 %v934, 40
      %v944 = vpop.permute.xlu0 %943
      %945 = vrot.lane.b32.xlu0 %v935, 40
      %v946 = vpop.permute.xlu0 %945
      %947 = vrot.lane.b32.xlu0 %v936, 40
      %v948 = vpop.permute.xlu0 %947
      %vm953 = vcmask 392512
      %954 = vst.msk [vmem:[#allocation5] sm:$0xff] %vm953, %v942
      %955 = vst.msk [vmem:[#allocation5 + $0x8] sm:$0xff] %vm953, %v944
      %956 = vst.msk [vmem:[#allocation5 + $0x10] sm:$0xff] %vm953, %v946
      %957 = vst.msk [vmem:[#allocation5 + $0x18] sm:$0xff] %vm953, %v948
      %s958 = scalar_lea.vmem [#allocation4], 32
      %v959 = vld [vmem:[%s958] sm:$0xff]
      %v960 = vld [vmem:[%s958 + $0x10] sm:$0xff]
      %v961 = vld [vmem:[%s958 + $0x20] sm:$0xff]
      %v962 = vld [vmem:[%s958 + $0x30] sm:$0xff]
      %v963 = vld [vmem:[%s958 + $0x40] sm:$0xff]
      %v964 = vld [vmem:[%s958 + $0x50] sm:$0xff]
      %v965 = vld [vmem:[%s958 + $0x60] sm:$0xff]
      %v966 = vld [vmem:[%s958 + $0x70] sm:$0xff]
      %v967 = vpack.c.bf16 %v960, %v959
      %v968 = vpack.c.bf16 %v962, %v961
      %v969 = vpack.c.bf16 %v964, %v963
      %v970 = vpack.c.bf16 %v966, %v965
      %975 = vrot.lane.b32.xlu0 %v967, 48
      %v976 = vpop.permute.xlu0 %975
      %977 = vrot.lane.b32.xlu0 %v968, 48
      %v978 = vpop.permute.xlu0 %977
      %979 = vrot.lane.b32.xlu0 %v969, 48
      %v980 = vpop.permute.xlu0 %979
      %981 = vrot.lane.b32.xlu0 %v970, 48
      %v982 = vpop.permute.xlu0 %981
      %vm987 = vcmask 458112
      %988 = vst.msk [vmem:[#allocation5] sm:$0xff] %vm987, %v976
      %989 = vst.msk [vmem:[#allocation5 + $0x8] sm:$0xff] %vm987, %v978
      %990 = vst.msk [vmem:[#allocation5 + $0x10] sm:$0xff] %vm987, %v980
      %991 = vst.msk [vmem:[#allocation5 + $0x18] sm:$0xff] %vm987, %v982
      %v992 = vld [vmem:[%s958 + $0x1] sm:$0xff]
      %v993 = vld [vmem:[%s958 + $0x11] sm:$0xff]
      %v994 = vld [vmem:[%s958 + $0x21] sm:$0xff]
      %v995 = vld [vmem:[%s958 + $0x31] sm:$0xff]
      %v996 = vld [vmem:[%s958 + $0x41] sm:$0xff]
      %v997 = vld [vmem:[%s958 + $0x51] sm:$0xff]
      %v998 = vld [vmem:[%s958 + $0x61] sm:$0xff]
      %v999 = vld [vmem:[%s958 + $0x71] sm:$0xff]
      %v1000 = vpack.c.bf16 %v993, %v992
      %v1001 = vpack.c.bf16 %v995, %v994
      %v1002 = vpack.c.bf16 %v997, %v996
      %v1003 = vpack.c.bf16 %v999, %v998
      %1008 = vrot.lane.b32.xlu0 %v1000, 56
      %v1009 = vpop.permute.xlu0 %1008
      %1010 = vrot.lane.b32.xlu0 %v1001, 56
      %v1011 = vpop.permute.xlu0 %1010
      %1012 = vrot.lane.b32.xlu0 %v1002, 56
      %v1013 = vpop.permute.xlu0 %1012
      %1014 = vrot.lane.b32.xlu0 %v1003, 56
      %v1015 = vpop.permute.xlu0 %1014
      %vm1020 = vcmask 523712
      %1021 = vst.msk [vmem:[#allocation5] sm:$0xff] %vm1020, %v1009
      %1022 = vst.msk [vmem:[#allocation5 + $0x8] sm:$0xff] %vm1020, %v1011
      %1023 = vst.msk [vmem:[#allocation5 + $0x10] sm:$0xff] %vm1020, %v1013
      %1024 = vst.msk [vmem:[#allocation5 + $0x18] sm:$0xff] %vm1020, %v1015
      %v1025 = vld [vmem:[%s958 + $0x2] sm:$0xff]
      %v1026 = vld [vmem:[%s958 + $0x12] sm:$0xff]
      %v1027 = vld [vmem:[%s958 + $0x22] sm:$0xff]
      %v1028 = vld [vmem:[%s958 + $0x32] sm:$0xff]
      %v1029 = vld [vmem:[%s958 + $0x42] sm:$0xff]
      %v1030 = vld [vmem:[%s958 + $0x52] sm:$0xff]
      %v1031 = vld [vmem:[%s958 + $0x62] sm:$0xff]
      %v1032 = vld [vmem:[%s958 + $0x72] sm:$0xff]
      %v1033 = vpack.c.bf16 %v1026, %v1025
      %v1034 = vpack.c.bf16 %v1028, %v1027
      %v1035 = vpack.c.bf16 %v1030, %v1029
      %v1036 = vpack.c.bf16 %v1032, %v1031
      %1041 = vrot.lane.b32.xlu0 %v1033, 64
      %v1042 = vpop.permute.xlu0 %1041
      %1043 = vrot.lane.b32.xlu0 %v1034, 64
      %v1044 = vpop.permute.xlu0 %1043
      %1045 = vrot.lane.b32.xlu0 %v1035, 64
      %v1046 = vpop.permute.xlu0 %1045
      %1047 = vrot.lane.b32.xlu0 %v1036, 64
      %v1048 = vpop.permute.xlu0 %1047
      %vm1053 = vcmask 589312
      %1054 = vst.msk [vmem:[#allocation5] sm:$0xff] %vm1053, %v1042
      %1055 = vst.msk [vmem:[#allocation5 + $0x8] sm:$0xff] %vm1053, %v1044
      %1056 = vst.msk [vmem:[#allocation5 + $0x10] sm:$0xff] %vm1053, %v1046
      %1057 = vst.msk [vmem:[#allocation5 + $0x18] sm:$0xff] %vm1053, %v1048
      %v1058 = vld [vmem:[#allocation5] sm:$0xff]
      %v1059 = vld [vmem:[#allocation5 + $0x8] sm:$0xff]
      %v1060 = vld [vmem:[#allocation5 + $0x10] sm:$0xff]
      %v1061 = vld [vmem:[#allocation5 + $0x18] sm:$0xff]
      %v1062 = vld [vmem:[%s3] sm:$0xf]
      %v1063 = vld [vmem:[%s3 + $0x4] sm:$0xf]
      %v1064 = vld [vmem:[%s3 + $0x8] sm:$0xf]
      %v1065 = vld [vmem:[%s3 + $0xc] sm:$0xf]
      %v1066 = vld [vmem:[%s3 + $0x10] sm:$0xf]
      %v1067 = vld [vmem:[%s3 + $0x14] sm:$0xf]
      %v1068 = vld [vmem:[%s3 + $0x18] sm:$0xf]
      %v1069 = vld [vmem:[%s3 + $0x1c] sm:$0xf]
      %v1070 = vld [vmem:[%s3 + $0x20] sm:$0xf]
      %v1071 = vld [vmem:[%s4] sm:$0x1]
      %v1073 = vlaneseq
      %v1074 = vshrl.u32 %v1073, 7
      %v1075 = vsub.s32 0, %v1074
      %v1076 = vrot.slane %v1071, %v1075
      %v1087 = vunpack.c.l.b16 %v1062
      %v1088 = vunpack.c.l.b16 %v1063
      %v1089 = vunpack.c.l.b16 %v1064
      %v1090 = vunpack.c.l.b16 %v1065
      %v1091 = vunpack.c.l.b16 %v1066
      %v1092 = vunpack.c.l.b16 %v1067
      %v1093 = vunpack.c.l.b16 %v1068
      %v1094 = vunpack.c.l.b16 %v1069
      %v1095 = vunpack.c.l.b16 %v1070
      %v1096 = vpack.c.b16 %v1088, %v1087
      %v1097 = vpack.c.b16 %v1090, %v1089
      %v1098 = vpack.c.b16 %v1092, %v1091
      %v1099 = vpack.c.b16 %v1094, %v1093
      %v1100 = vpack.c.b16 %v1095, %v1095
      %vm1105 = vcmask 588800
      %v1107 = vsel %vm1105, %v1058, 0
      %v1110 = vsel %vm1105, %v1059, 0
      %v1113 = vsel %vm1105, %v1060, 0
      %v1116 = vsel %vm1105, %v1061, 0
      %vm1118 = vcmask 1043456
      %v1120 = vsel %vm1118, %v1100, 0
      %1122 = vmatprep.subr.bf16.mxu0 0
      %1123 = vmatpush1.bf16.msra.mxu0 %v1096
      %1124 = vmatprep.subr.bf16.mxu0 0
      %1125 = vmatpush1.bf16.msra.mxu0 %v1097
      %1126 = vmatprep.subr.bf16.mxu0 0
      %1127 = vmatpush1.bf16.msra.mxu0 %v1098
      %1128 = vmatprep.subr.bf16.mxu0 0
      %1129 = vmatpush1.bf16.msra.mxu0 %v1099
      %1130 = vmatprep.subr.bf16.mxu0 0
      %1131 = vmatpush1.bf16.msra.mxu0 %v1120
      %1132 = vmatprep.subr.bf16.mxu0 0
      %1133 = vmatpush1.bf16.msra.mxu0 0
      %1134 = vmatprep.subr.bf16.mxu0 0
      %1135 = vmatpush1.bf16.msra.mxu0 0
      %1136 = vmatprep.subr.bf16.mxu0 0
      %1137 = vmatpush1.bf16.msra.mxu0 0
      %1138 = vmatprep.subr.bf16.mxu0 0
      %1139 = vmatpush1.bf16.msra.mxu0 0
      %1140 = vmatprep.subr.bf16.mxu0 0
      %1141 = vmatpush1.bf16.msra.mxu0 0
      %1142 = vmatprep.subr.bf16.mxu0 0
      %1143 = vmatpush1.bf16.msra.mxu0 0
      %1144 = vmatprep.subr.bf16.mxu0 0
      %1145 = vmatpush1.bf16.msra.mxu0 0
      %1146 = vmatprep.subr.bf16.mxu0 0
      %1147 = vmatpush1.bf16.msra.mxu0 0
      %1148 = vmatprep.subr.bf16.mxu0 0
      %1149 = vmatpush1.bf16.msra.mxu0 0
      %1150 = vmatprep.subr.bf16.mxu0 0
      %1151 = vmatpush1.bf16.msra.mxu0 0
      %1152 = vmatprep.subr.bf16.mxu0 0
      %1153 = vmatpush1.bf16.msra.mxu0 0
      %1154 = vmatprep.mubr.bf16.mxu0 0
      %1155 = vmatmul.mubr.bf16.gmra.mrb[0].mxu0 %v1107
      %v1156 = vpop.f32.mrb[0].mxu0
      %v1157 = vadd.f32 %v1076, %v1156
      %v1158 = vpop.f32.mrb[0].mxu0
      %v1159 = vpop.f32.mrb[0].mxu0
      %v1160 = vadd.f32 %v1076, %v1159
      %v1161 = vpop.f32.mrb[0].mxu0
      %1162 = vmatprep.mubr.bf16.mxu0 0
      %1163 = vmatmul.mubr.bf16.gmra.mrb[0].mxu0 %v1110
      %v1164 = vpop.f32.mrb[0].mxu0
      %v1165 = vadd.f32 %v1076, %v1164
      %v1166 = vpop.f32.mrb[0].mxu0
      %v1167 = vpop.f32.mrb[0].mxu0
      %v1168 = vadd.f32 %v1076, %v1167
      %v1169 = vpop.f32.mrb[0].mxu0
      %1170 = vmatprep.mubr.bf16.mxu0 0
      %1171 = vmatmul.mubr.bf16.gmra.mrb[0].mxu0 %v1113
      %v1172 = vpop.f32.mrb[0].mxu0
      %v1173 = vadd.f32 %v1076, %v1172
      %v1174 = vpop.f32.mrb[0].mxu0
      %v1175 = vpop.f32.mrb[0].mxu0
      %v1176 = vadd.f32 %v1076, %v1175
      %v1177 = vpop.f32.mrb[0].mxu0
      %1178 = vmatprep.mubr.bf16.mxu0 0
      %1179 = vmatmul.mubr.bf16.gmra.mrb[0].mxu0 %v1116
      %v1180 = vpop.f32.mrb[0].mxu0
      %v1181 = vadd.f32 %v1076, %v1180
      %v1182 = vpop.f32.mrb[0].mxu0
      %v1183 = vpop.f32.mrb[0].mxu0
      %v1184 = vadd.f32 %v1076, %v1183
      %v1185 = vpop.f32.mrb[0].mxu0
      %1186 = vdwg.mxu0
      %v1187 = vmax.f32 %v1157, 0.0
      %v1188 = vmax.f32 %v1160, 0.0
      %v1189 = vmax.f32 %v1165, 0.0
      %v1190 = vmax.f32 %v1168, 0.0
      %v1191 = vmax.f32 %v1173, 0.0
      %v1192 = vmax.f32 %v1176, 0.0
      %v1193 = vmax.f32 %v1181, 0.0
      %v1194 = vmax.f32 %v1184, 0.0
      %1195 = vst.msk [vmem:[%s224] sm:$0xff] %vm746, %v1187
      %1196 = vst.msk [vmem:[%s224 + $0x8] sm:$0xff] %vm746, %v1188
      %1197 = vst.msk [vmem:[%s224 + $0x10] sm:$0xff] %vm746, %v1189
      %1198 = vst.msk [vmem:[%s224 + $0x18] sm:$0xff] %vm746, %v1190
      %1199 = vst.msk [vmem:[%s224 + $0x20] sm:$0xff] %vm746, %v1191
      %1200 = vst.msk [vmem:[%s224 + $0x28] sm:$0xff] %vm746, %v1192
      %1201 = vst.msk [vmem:[%s224 + $0x30] sm:$0xff] %vm746, %v1193
      %1202 = vst.msk [vmem:[%s224 + $0x38] sm:$0xff] %vm746, %v1194
      %p1203 = scmp.lt.s32.totalorder %s16, 1
      %s1204 = scalar_select %p1203, %s16, 1
      %s1205 = smul.addr %s1204, 8
      %s1206 = smul.addr %s1205, 8
      %s1207 = scalar_lea.vmem %s5, %s1206
      // Predicated region
      $region41: #{unet_down_forward.1} parent=39 // pred_check
        %p1208 = pneg %p144
      $region42: #{unet_down_forward.1} parent=39 // pred_check_branch
        %1210 = sbr.rel (%p1208) target = $region44
      $region43: #{unet_down_forward.1} parent=39 // pred_region
        _
      $region44: #{unet_down_forward.1} parent=39 // pred_fallthru
        _
    $region40: #{unet_down_forward.1} parent=5 // pred_fallthru
      _
    %p1211 = scmp.le.s32.totalorder 2, %s11
    // Predicated region
    $region45: #{unet_down_forward.1} parent=5 // pred_check
      %p1212 = pneg %p1211
    $region46: #{unet_down_forward.1} parent=5 // pred_check_branch
      %1214 = sbr.rel (%p1212) target = $region48
    $region47: #{unet_down_forward.1} parent=5 // pred_region
      %s1215 = ssub.s32 %s11, 2
      // Predicated region
      $region49: #{unet_down_forward.1} parent=47 // pred_check
        %p1216 = pneg %p150
      $region50: #{unet_down_forward.1} parent=47 // pred_check_branch
        %1218 = sbr.rel (%p1216) target = $region52
      $region51: #{unet_down_forward.1} parent=47 // pred_region
        %p1219 = scmp.lt.s32.totalorder %s17, 1
        %s1220 = scalar_select %p1219, %s17, 1
        %s1221 = smul.addr %s1220, 8
        %s1222 = smul.addr %s1221, 8
        %s1223 = scalar_lea.vmem %s5, %s1222
      $region52: #{unet_down_forward.1} parent=47 // pred_fallthru
        _
    $region48: #{unet_down_forward.1} parent=5 // pred_fallthru
      _
  $region6: #{unet_down_forward.1} parent=0 // loop_footer
    %s15 = sadd.s32 1, %s11
  $region7: #{unet_down_forward.1} parent=0 // loop_footer_branch
    %10 = sbr.rel target = $region3
  $region8: #{unet_down_forward.1} parent=0 // loop_exit
    _

</llo_original>
